<compile_context>
chip_gen: v7x
topology: tpu7x:2x2x1
jax: 0.10.0
libtpu: 0.0.40
codegen_flags: <defaults>
</compile_context>

<pallas_src>
import jax
import jax.numpy as jnp
from jax.experimental import pallas as pl
from jax.experimental.pallas import tpu as pltpu


# ---------------------------------------------------------------------------
# Pallas kernels (transposed, lane-dense along M = N*Ho*Wo)
# ---------------------------------------------------------------------------
def _conv_relu_kernel(p_ref, w_ref, b_ref, f_ref):
    """f = relu(W^T @ patches^T + b).  p:(K,tm) w:(Cout,K) b:(Cout,1) f:(Cout,tm)."""
    acc = jnp.dot(w_ref[...], p_ref[...], preferred_element_type=jnp.float32)
    f_ref[...] = jnp.maximum(acc + b_ref[...], 0.0)


def _conv_relu_pred_kernel(p_ref, w_ref, b_ref, pw_ref, pb_ref,
                           f_ref, praw_ref, psig_ref):
    """Fused level: 3x3 conv + bias + ReLU, then 1x1 predictor (+ sigmoid).

    p:(K,tm) w:(Cout,K) b:(Cout,1) pw:(1,Cout) pb:(1,1)
    f:(Cout,tm) praw:(1,tm) psig:(1,tm)   -- all lane-dense along tm.
    """
    acc = jnp.dot(w_ref[...], p_ref[...], preferred_element_type=jnp.float32)
    feat = jnp.maximum(acc + b_ref[...], 0.0)
    f_ref[...] = feat
    pred = jnp.dot(pw_ref[...], feat, preferred_element_type=jnp.float32) + pb_ref[...]
    praw_ref[...] = pred                       # raw prediction feeds the decoder concat
    psig_ref[...] = jax.nn.sigmoid(pred)       # final_activation, fused (EUP)


# ---------------------------------------------------------------------------
# Wrapper: transposed im2col (XLA glue) + one fused pallas_call per level
# ---------------------------------------------------------------------------
def _im2col_T(x_nhwc, stride):
    """Build patches^T of shape (9*Cin, N*Ho*Wo); K ordered (ky, kx, cin)."""
    N, H, W, Cin = x_nhwc.shape
    xp = jnp.pad(x_nhwc, ((0, 0), (1, 1), (1, 1), (0, 0)))
    Ho = (H - 1) // stride + 1
    Wo = (W - 1) // stride + 1
    M = N * Ho * Wo
    taps = []
    for ky in range(3):
        for kx in range(3):
            sl = xp[:,
                    ky: ky + stride * (Ho - 1) + 1: stride,
                    kx: kx + stride * (Wo - 1) + 1: stride,
                    :]                                        # (N, Ho, Wo, Cin)
            taps.append(jnp.transpose(sl, (3, 0, 1, 2)).reshape(Cin, M))
    return jnp.concatenate(taps, axis=0), (N, Ho, Wo)         # (9*Cin, M)


def _tile_m(M):
    # 256-wide lane tiles when there is enough work to shard across v7x's 2 TCs;
    # otherwise one full-width block.
    return 256 if (M >= 512 and M % 256 == 0) else M


def conv_level(x_nhwc, w, b, *, stride=1, pred_w=None, pred_b=None):
    """One UNet level: 3x3 conv (+ReLU) and optionally fused 1x1 predictor+sigmoid."""
    patches_t, (N, Ho, Wo) = _im2col_T(x_nhwc, stride)
    K, M = patches_t.shape
    Cout = w.shape[-1]
    w_t = w.reshape(K, Cout).T                  # (Cout, 9*Cin), K order matches patches
    b2 = b.reshape(Cout, 1)
    tm = _tile_m(M)
    grid = (M // tm,)
    cparams = pltpu.CompilerParams(dimension_semantics=("parallel",))

    if pred_w is None:
        feat = pl.pallas_call(
            _conv_relu_kernel,
            out_shape=jax.ShapeDtypeStruct((Cout, M), jnp.float32),
            grid=grid,
            in_specs=[pl.BlockSpec((K, tm),    lambda i: (0, i)),
                      pl.BlockSpec((Cout, K),  lambda i: (0, 0)),
                      pl.BlockSpec((Cout, 1),  lambda i: (0, 0))],
            out_specs=pl.BlockSpec((Cout, tm), lambda i: (0, i)),
            compiler_params=cparams,
        )(patches_t, w_t, b2)
        return jnp.transpose(feat.reshape(Cout, N, Ho, Wo), (1, 2, 3, 0))   # NHWC

    pw_t = pred_w.reshape(Cout, 1).T            # (1, Cout)
    pb2 = pred_b.reshape(1, 1)
    feat, praw, psig = pl.pallas_call(
        _conv_relu_pred_kernel,
        out_shape=(jax.ShapeDtypeStruct((Cout, M), jnp.float32),
                   jax.ShapeDtypeStruct((1, M), jnp.float32),
                   jax.ShapeDtypeStruct((1, M), jnp.float32)),
        grid=grid,
        in_specs=[pl.BlockSpec((K, tm),    lambda i: (0, i)),
                  pl.BlockSpec((Cout, K),  lambda i: (0, 0)),
                  pl.BlockSpec((Cout, 1),  lambda i: (0, 0)),
                  pl.BlockSpec((1, Cout),  lambda i: (0, 0)),
                  pl.BlockSpec((1, 1),     lambda i: (0, 0))],
        out_specs=(pl.BlockSpec((Cout, tm), lambda i: (0, i)),
                   pl.BlockSpec((1, tm),    lambda i: (0, i)),
                   pl.BlockSpec((1, tm),    lambda i: (0, i))),
        compiler_params=cparams,
    )(patches_t, w_t, b2, pw_t, pb2)

    feat_nhwc = jnp.transpose(feat.reshape(Cout, N, Ho, Wo), (1, 2, 3, 0))  # NHWC
    praw_nhwc = jnp.transpose(praw.reshape(1, N, Ho, Wo), (1, 2, 3, 0))     # NHWC (feeds concat)
    psig_nchw = jnp.transpose(psig.reshape(1, N, Ho, Wo), (1, 0, 2, 3))     # NCHW (final output)
    return feat_nhwc, praw_nhwc, psig_nchw


def upsample2(x):
    """Nearest-neighbour 2x upsampling (== nn.Upsample(scale_factor=2)); data movement only."""
    return jnp.repeat(jnp.repeat(x, 2, axis=1), 2, axis=2)


# ---------------------------------------------------------------------------
# Parameters (deterministic, synthetic)
# ---------------------------------------------------------------------------
def _conv_init(key, kh, kw, cin, cout):
    k1, k2 = jax.random.split(key)
    fan_in = kh * kw * cin
    w = jax.random.normal(k1, (kh, kw, cin, cout), jnp.float32) / jnp.sqrt(fan_in)
    b = 0.01 * jax.random.normal(k2, (cout,), jnp.float32)
    return {"w": w, "b": b}


def init_params(key):
    ks = jax.random.split(key, 8)
    return {
        "encoders": [
            _conv_init(ks[0], 3, 3, 4, 8),     # stride 1
            _conv_init(ks[1], 3, 3, 8, 16),    # stride 2
        ],
        "base": _conv_init(ks[2], 3, 3, 16, 32),   # stride 2
        "decoders": [
            _conv_init(ks[3], 3, 3, 32 + 16 + 1, 16),
            _conv_init(ks[4], 3, 3, 16 + 8 + 1, 8),
        ],
        "predictors": [
            _conv_init(ks[5], 1, 1, 8, 1),     # level 0 (finest)
            _conv_init(ks[6], 1, 1, 16, 1),    # level 1
            _conv_init(ks[7], 1, 1, 32, 1),    # level 2 (coarsest / base)
        ],
    }


# ---------------------------------------------------------------------------
# UNetSkeletonMultiscale.forward
# ---------------------------------------------------------------------------
ENCODER_STRIDES = (1, 2)
BASE_STRIDE = 2


def unet_multiscale_forward(x_nchw, params):
    # layout: NCHW -> NHWC for the TPU kernels; predictions come back NCHW.
    x = jnp.transpose(x_nchw, (0, 2, 3, 1))

    encoder_out = []
    for p, s in zip(params["encoders"], ENCODER_STRIDES):
        x = conv_level(x, p["w"], p["b"], stride=s)
        encoder_out.append(x)

    preds = params["predictors"]
    # base + predictors[-1] + sigmoid fused into one call
    x, praw, psig = conv_level(x, params["base"]["w"], params["base"]["b"],
                               stride=BASE_STRIDE,
                               pred_w=preds[-1]["w"], pred_b=preds[-1]["b"])
    raw_preds = [praw]          # raw predictions feed the decoder concats
    sig_outs = [psig]           # sigmoid'ed predictions are the module outputs

    max_level = len(params["decoders"]) - 1
    for level, dp in enumerate(params["decoders"]):
        cat = jnp.concatenate(
            [upsample2(x), encoder_out[max_level - level], upsample2(raw_preds[-1])],
            axis=-1)
        pp = preds[max_level - level]
        x, praw, psig = conv_level(cat, dp["w"], dp["b"], stride=1,
                                   pred_w=pp["w"], pred_b=pp["b"])
        raw_preds.append(praw)
        sig_outs.append(psig)

    # reversed outputs: finest first, already sigmoid'ed, already NCHW
    return tuple(reversed(sig_outs))


# ---------------------------------------------------------------------------
if __name__ == "__main__":
    key = jax.random.PRNGKey(0)
    k_x, k_p = jax.random.split(key)

    x = jax.random.normal(k_x, (2, 4, 16, 16), jnp.float32)   # NCHW, like PyTorch
    params = init_params(k_p)

    outs = jax.jit(unet_multiscale_forward)(x, params)
    outs = jax.block_until_ready(outs)

    expected = [(2, 1, 16, 16), (2, 1, 8, 8), (2, 1, 4, 4)]
    assert len(outs) == 3
    for o, shp in zip(outs, expected):
        assert o.shape == shp, (o.shape, shp)
        assert bool(jnp.all(jnp.isfinite(o)))
        assert bool(jnp.all((o >= 0.0) & (o <= 1.0)))   # sigmoid range

    print("KERNEL_OK")
</pallas_src>

<mosaic_0001>
module attributes {stable_mosaic.version = 11 : i64} {
  func.func @_conv_relu_kernel(%arg0: i32, %arg1: memref<36x256xf32, #tpu.memory_space<vmem>>, %arg2: memref<8x36xf32, #tpu.memory_space<vmem>>, %arg3: memref<8x1xf32, #tpu.memory_space<vmem>>, %arg4: memref<8x256xf32, #tpu.memory_space<vmem>>) attributes {dimension_semantics = [#tpu.dimension_semantics<parallel>], iteration_bounds = array<i64: 2>, scalar_prefetch = 0 : i64, scratch_operands = 0 : i64, tpu.core_type = #tpu.core_type<tc>, window_params = [{transform_indices = @transform_0, window_bounds = array<i64: 36, 256>}, {pipeline_mode = #tpu.pipeline_mode<synchronous>, transform_indices = @transform_1, window_bounds = array<i64: 8, 36>}, {pipeline_mode = #tpu.pipeline_mode<synchronous>, transform_indices = @transform_2, window_bounds = array<i64: 8, 1>}, {transform_indices = @transform_3, window_bounds = array<i64: 8, 256>}]} {
    %c0 = arith.constant 0 : index
    %c0_0 = arith.constant 0 : index
    %0 = vector.load %arg2[%c0, %c0_0] : memref<8x36xf32, #tpu.memory_space<vmem>>, vector<8x36xf32>
    %c0_1 = arith.constant 0 : index
    %c0_2 = arith.constant 0 : index
    %1 = vector.load %arg1[%c0_1, %c0_2] : memref<36x256xf32, #tpu.memory_space<vmem>>, vector<36x256xf32>
    %cst = arith.constant dense<0.000000e+00> : vector<8x256xf32>
    %2 = tpu.matmul %0, %1, %cst {dimension_numbers = #tpu.dot_dimension_numbers<[1], [0], [0], [1], [0, 0, 1, 1], [], []>} : vector<8x36xf32>, vector<36x256xf32>, vector<8x256xf32> -> vector<8x256xf32>
    %c0_3 = arith.constant 0 : index
    %c0_4 = arith.constant 0 : index
    %3 = vector.load %arg3[%c0_3, %c0_4] : memref<8x1xf32, #tpu.memory_space<vmem>>, vector<8x1xf32>
    %4 = vector.broadcast %3 : vector<8x1xf32> to vector<8x256xf32>
    %5 = arith.addf %2, %4 : vector<8x256xf32>
    %cst_5 = arith.constant 0.000000e+00 : f32
    %6 = vector.broadcast %cst_5 : f32 to vector<8x256xf32>
    %7 = arith.maximumf %5, %6 : vector<8x256xf32>
    %c0_6 = arith.constant 0 : index
    %c0_7 = arith.constant 0 : index
    %8 = vector.load %arg4[%c0_6, %c0_7] : memref<8x256xf32, #tpu.memory_space<vmem>>, vector<8x256xf32>
    tpu.vector_store %arg4[%c0_6, %c0_7], %7 {strides = array<i32>} : memref<8x256xf32, #tpu.memory_space<vmem>>, vector<8x256xf32>,
    return
  }
  func.func @transform_0(%arg0: i32) -> (i32, i32) {
    %c0_i32 = arith.constant 0 : i32
    %c0_i32_0 = arith.constant 0 : i32
    return %c0_i32, %arg0 : i32, i32
  }
  func.func @transform_1(%arg0: i32) -> (i32, i32) {
    %c0_i32 = arith.constant 0 : i32
    %c0_i32_0 = arith.constant 0 : i32
    %c0_i32_1 = arith.constant 0 : i32
    return %c0_i32, %c0_i32_0 : i32, i32
  }
  func.func @transform_2(%arg0: i32) -> (i32, i32) {
    %c0_i32 = arith.constant 0 : i32
    %c0_i32_0 = arith.constant 0 : i32
    %c0_i32_1 = arith.constant 0 : i32
    return %c0_i32, %c0_i32_0 : i32, i32
  }
  func.func @transform_3(%arg0: i32) -> (i32, i32) {
    %c0_i32 = arith.constant 0 : i32
    %c0_i32_0 = arith.constant 0 : i32
    return %c0_i32, %arg0 : i32, i32
  }
}

module attributes {stable_mosaic.version = 11 : i64} {
  func.func @_conv_relu_kernel(%arg0: i32, %arg1: memref<72x128xf32, #tpu.memory_space<vmem>>, %arg2: memref<16x72xf32, #tpu.memory_space<vmem>>, %arg3: memref<16x1xf32, #tpu.memory_space<vmem>>, %arg4: memref<16x128xf32, #tpu.memory_space<vmem>>) attributes {dimension_semantics = [#tpu.dimension_semantics<parallel>], iteration_bounds = array<i64: 1>, scalar_prefetch = 0 : i64, scratch_operands = 0 : i64, tpu.core_type = #tpu.core_type<tc>, window_params = [{transform_indices = @transform_0, window_bounds = array<i64: 72, 128>}, {pipeline_mode = #tpu.pipeline_mode<synchronous>, transform_indices = @transform_1, window_bounds = array<i64: 16, 72>}, {pipeline_mode = #tpu.pipeline_mode<synchronous>, transform_indices = @transform_2, window_bounds = array<i64: 16, 1>}, {transform_indices = @transform_3, window_bounds = array<i64: 16, 128>}]} {
    %c0 = arith.constant 0 : index
    %c0_0 = arith.constant 0 : index
    %0 = vector.load %arg2[%c0, %c0_0] : memref<16x72xf32, #tpu.memory_space<vmem>>, vector<16x72xf32>
    %c0_1 = arith.constant 0 : index
    %c0_2 = arith.constant 0 : index
    %1 = vector.load %arg1[%c0_1, %c0_2] : memref<72x128xf32, #tpu.memory_space<vmem>>, vector<72x128xf32>
    %cst = arith.constant dense<0.000000e+00> : vector<16x128xf32>
    %2 = tpu.matmul %0, %1, %cst {dimension_numbers = #tpu.dot_dimension_numbers<[1], [0], [0], [1], [0, 0, 1, 1], [], []>} : vector<16x72xf32>, vector<72x128xf32>, vector<16x128xf32> -> vector<16x128xf32>
    %c0_3 = arith.constant 0 : index
    %c0_4 = arith.constant 0 : index
    %3 = vector.load %arg3[%c0_3, %c0_4] : memref<16x1xf32, #tpu.memory_space<vmem>>, vector<16x1xf32>
    %4 = vector.broadcast %3 : vector<16x1xf32> to vector<16x128xf32>
    %5 = arith.addf %2, %4 : vector<16x128xf32>
    %cst_5 = arith.constant 0.000000e+00 : f32
    %6 = vector.broadcast %cst_5 : f32 to vector<16x128xf32>
    %7 = arith.maximumf %5, %6 : vector<16x128xf32>
    %c0_6 = arith.constant 0 : index
    %c0_7 = arith.constant 0 : index
    %8 = vector.load %arg4[%c0_6, %c0_7] : memref<16x128xf32, #tpu.memory_space<vmem>>, vector<16x128xf32>
    tpu.vector_store %arg4[%c0_6, %c0_7], %7 {strides = array<i32>} : memref<16x128xf32, #tpu.memory_space<vmem>>, vector<16x128xf32>,
    return
  }
  func.func @transform_0(%arg0: i32) -> (i32, i32) {
    %c0_i32 = arith.constant 0 : i32
    %c0_i32_0 = arith.constant 0 : i32
    return %c0_i32, %arg0 : i32, i32
  }
  func.func @transform_1(%arg0: i32) -> (i32, i32) {
    %c0_i32 = arith.constant 0 : i32
    %c0_i32_0 = arith.constant 0 : i32
    %c0_i32_1 = arith.constant 0 : i32
    return %c0_i32, %c0_i32_0 : i32, i32
  }
  func.func @transform_2(%arg0: i32) -> (i32, i32) {
    %c0_i32 = arith.constant 0 : i32
    %c0_i32_0 = arith.constant 0 : i32
    %c0_i32_1 = arith.constant 0 : i32
    return %c0_i32, %c0_i32_0 : i32, i32
  }
  func.func @transform_3(%arg0: i32) -> (i32, i32) {
    %c0_i32 = arith.constant 0 : i32
    %c0_i32_0 = arith.constant 0 : i32
    return %c0_i32, %arg0 : i32, i32
  }
}

module attributes {stable_mosaic.version = 11 : i64} {
  func.func @_conv_relu_pred_kernel(%arg0: i32, %arg1: memref<144x32xf32, #tpu.memory_space<vmem>>, %arg2: memref<32x144xf32, #tpu.memory_space<vmem>>, %arg3: memref<32x1xf32, #tpu.memory_space<vmem>>, %arg4: memref<1x32xf32, #tpu.memory_space<vmem>>, %arg5: memref<1x1xf32, #tpu.memory_space<vmem>>, %arg6: memref<32x32xf32, #tpu.memory_space<vmem>>, %arg7: memref<1x32xf32, #tpu.memory_space<vmem>>, %arg8: memref<1x32xf32, #tpu.memory_space<vmem>>) attributes {dimension_semantics = [#tpu.dimension_semantics<parallel>], iteration_bounds = array<i64: 1>, scalar_prefetch = 0 : i64, scratch_operands = 0 : i64, tpu.core_type = #tpu.core_type<tc>, window_params = [{transform_indices = @transform_0, window_bounds = array<i64: 144, 32>}, {pipeline_mode = #tpu.pipeline_mode<synchronous>, transform_indices = @transform_1, window_bounds = array<i64: 32, 144>}, {pipeline_mode = #tpu.pipeline_mode<synchronous>, transform_indices = @transform_2, window_bounds = array<i64: 32, 1>}, {pipeline_mode = #tpu.pipeline_mode<synchronous>, transform_indices = @transform_3, window_bounds = array<i64: 1, 32>}, {pipeline_mode = #tpu.pipeline_mode<synchronous>, transform_indices = @transform_4, window_bounds = array<i64: 1, 1>}, {transform_indices = @transform_5, window_bounds = array<i64: 32, 32>}, {transform_indices = @transform_6, window_bounds = array<i64: 1, 32>}, {transform_indices = @transform_7, window_bounds = array<i64: 1, 32>}]} {
    %c0 = arith.constant 0 : index
    %c0_0 = arith.constant 0 : index
    %0 = vector.load %arg2[%c0, %c0_0] : memref<32x144xf32, #tpu.memory_space<vmem>>, vector<32x144xf32>
    %c0_1 = arith.constant 0 : index
    %c0_2 = arith.constant 0 : index
    %1 = vector.load %arg1[%c0_1, %c0_2] : memref<144x32xf32, #tpu.memory_space<vmem>>, vector<144x32xf32>
    %cst = arith.constant dense<0.000000e+00> : vector<32x32xf32>
    %2 = tpu.matmul %0, %1, %cst {dimension_numbers = #tpu.dot_dimension_numbers<[1], [0], [0], [1], [0, 0, 1, 1], [], []>} : vector<32x144xf32>, vector<144x32xf32>, vector<32x32xf32> -> vector<32x32xf32>
    %c0_3 = arith.constant 0 : index
    %c0_4 = arith.constant 0 : index
    %3 = vector.load %arg3[%c0_3, %c0_4] : memref<32x1xf32, #tpu.memory_space<vmem>>, vector<32x1xf32>
    %4 = vector.broadcast %3 : vector<32x1xf32> to vector<32x32xf32>
    %5 = arith.addf %2, %4 : vector<32x32xf32>
    %cst_5 = arith.constant 0.000000e+00 : f32
    %6 = vector.broadcast %cst_5 : f32 to vector<32x32xf32>
    %7 = arith.maximumf %5, %6 : vector<32x32xf32>
    %c0_6 = arith.constant 0 : index
    %c0_7 = arith.constant 0 : index
    %8 = vector.load %arg6[%c0_6, %c0_7] : memref<32x32xf32, #tpu.memory_space<vmem>>, vector<32x32xf32>
    tpu.vector_store %arg6[%c0_6, %c0_7], %7 {strides = array<i32>} : memref<32x32xf32, #tpu.memory_space<vmem>>, vector<32x32xf32>,
    %c0_8 = arith.constant 0 : index
    %c0_9 = arith.constant 0 : index
    %9 = vector.load %arg4[%c0_8, %c0_9] : memref<1x32xf32, #tpu.memory_space<vmem>>, vector<1x32xf32>
    %cst_10 = arith.constant dense<0.000000e+00> : vector<1x32xf32>
    %10 = tpu.matmul %9, %7, %cst_10 {dimension_numbers = #tpu.dot_dimension_numbers<[1], [0], [0], [1], [0, 0, 1, 1], [], []>} : vector<1x32xf32>, vector<32x32xf32>, vector<1x32xf32> -> vector<1x32xf32>
    %c0_11 = arith.constant 0 : index
    %c0_12 = arith.constant 0 : index
    %11 = vector.load %arg5[%c0_11, %c0_12] : memref<1x1xf32, #tpu.memory_space<vmem>>, vector<1x1xf32>
    %12 = vector.broadcast %11 : vector<1x1xf32> to vector<1x32xf32>
    %13 = arith.addf %10, %12 : vector<1x32xf32>
    %c0_13 = arith.constant 0 : index
    %c0_14 = arith.constant 0 : index
    %14 = vector.load %arg7[%c0_13, %c0_14] : memref<1x32xf32, #tpu.memory_space<vmem>>, vector<1x32xf32>
    tpu.vector_store %arg7[%c0_13, %c0_14], %13 {strides = array<i32>} : memref<1x32xf32, #tpu.memory_space<vmem>>, vector<1x32xf32>,
    %15 = arith.negf %13 : vector<1x32xf32>
    %16 = math.exp %15 : vector<1x32xf32>
    %cst_15 = arith.constant 1.000000e+00 : f32
    %17 = vector.broadcast %cst_15 : f32 to vector<1x32xf32>
    %18 = arith.addf %17, %16 : vector<1x32xf32>
    %19 = arith.divf %17, %18 : vector<1x32xf32>
    %c0_16 = arith.constant 0 : index
    %c0_17 = arith.constant 0 : index
    %20 = vector.load %arg8[%c0_16, %c0_17] : memref<1x32xf32, #tpu.memory_space<vmem>>, vector<1x32xf32>
    tpu.vector_store %arg8[%c0_16, %c0_17], %19 {strides = array<i32>} : memref<1x32xf32, #tpu.memory_space<vmem>>, vector<1x32xf32>,
    return
  }
  func.func @transform_0(%arg0: i32) -> (i32, i32) {
    %c0_i32 = arith.constant 0 : i32
    %c0_i32_0 = arith.constant 0 : i32
    return %c0_i32, %arg0 : i32, i32
  }
  func.func @transform_1(%arg0: i32) -> (i32, i32) {
    %c0_i32 = arith.constant 0 : i32
    %c0_i32_0 = arith.constant 0 : i32
    %c0_i32_1 = arith.constant 0 : i32
    return %c0_i32, %c0_i32_0 : i32, i32
  }
  func.func @transform_2(%arg0: i32) -> (i32, i32) {
    %c0_i32 = arith.constant 0 : i32
    %c0_i32_0 = arith.constant 0 : i32
    %c0_i32_1 = arith.constant 0 : i32
    return %c0_i32, %c0_i32_0 : i32, i32
  }
  func.func @transform_3(%arg0: i32) -> (i32, i32) {
    %c0_i32 = arith.constant 0 : i32
    %c0_i32_0 = arith.constant 0 : i32
    %c0_i32_1 = arith.constant 0 : i32
    return %c0_i32, %c0_i32_0 : i32, i32
  }
  func.func @transform_4(%arg0: i32) -> (i32, i32) {
    %c0_i32 = arith.constant 0 : i32
    %c0_i32_0 = arith.constant 0 : i32
    %c0_i32_1 = arith.constant 0 : i32
    return %c0_i32, %c0_i32_0 : i32, i32
  }
  func.func @transform_5(%arg0: i32) -> (i32, i32) {
    %c0_i32 = arith.constant 0 : i32
    %c0_i32_0 = arith.constant 0 : i32
    return %c0_i32, %arg0 : i32, i32
  }
  func.func @transform_6(%arg0: i32) -> (i32, i32) {
    %c0_i32 = arith.constant 0 : i32
    %c0_i32_0 = arith.constant 0 : i32
    return %c0_i32, %arg0 : i32, i32
  }
  func.func @transform_7(%arg0: i32) -> (i32, i32) {
    %c0_i32 = arith.constant 0 : i32
    %c0_i32_0 = arith.constant 0 : i32
    return %c0_i32, %arg0 : i32, i32
  }
}

module attributes {stable_mosaic.version = 11 : i64} {
  func.func @_conv_relu_pred_kernel(%arg0: i32, %arg1: memref<441x128xf32, #tpu.memory_space<vmem>>, %arg2: memref<16x441xf32, #tpu.memory_space<vmem>>, %arg3: memref<16x1xf32, #tpu.memory_space<vmem>>, %arg4: memref<1x16xf32, #tpu.memory_space<vmem>>, %arg5: memref<1x1xf32, #tpu.memory_space<vmem>>, %arg6: memref<16x128xf32, #tpu.memory_space<vmem>>, %arg7: memref<1x128xf32, #tpu.memory_space<vmem>>, %arg8: memref<1x128xf32, #tpu.memory_space<vmem>>) attributes {dimension_semantics = [#tpu.dimension_semantics<parallel>], iteration_bounds = array<i64: 1>, scalar_prefetch = 0 : i64, scratch_operands = 0 : i64, tpu.core_type = #tpu.core_type<tc>, window_params = [{transform_indices = @transform_0, window_bounds = array<i64: 441, 128>}, {pipeline_mode = #tpu.pipeline_mode<synchronous>, transform_indices = @transform_1, window_bounds = array<i64: 16, 441>}, {pipeline_mode = #tpu.pipeline_mode<synchronous>, transform_indices = @transform_2, window_bounds = array<i64: 16, 1>}, {pipeline_mode = #tpu.pipeline_mode<synchronous>, transform_indices = @transform_3, window_bounds = array<i64: 1, 16>}, {pipeline_mode = #tpu.pipeline_mode<synchronous>, transform_indices = @transform_4, window_bounds = array<i64: 1, 1>}, {transform_indices = @transform_5, window_bounds = array<i64: 16, 128>}, {transform_indices = @transform_6, window_bounds = array<i64: 1, 128>}, {transform_indices = @transform_7, window_bounds = array<i64: 1, 128>}]} {
    %c0 = arith.constant 0 : index
    %c0_0 = arith.constant 0 : index
    %0 = vector.load %arg2[%c0, %c0_0] : memref<16x441xf32, #tpu.memory_space<vmem>>, vector<16x441xf32>
    %c0_1 = arith.constant 0 : index
    %c0_2 = arith.constant 0 : index
    %1 = vector.load %arg1[%c0_1, %c0_2] : memref<441x128xf32, #tpu.memory_space<vmem>>, vector<441x128xf32>
    %cst = arith.constant dense<0.000000e+00> : vector<16x128xf32>
    %2 = tpu.matmul %0, %1, %cst {dimension_numbers = #tpu.dot_dimension_numbers<[1], [0], [0], [1], [0, 0, 1, 1], [], []>} : vector<16x441xf32>, vector<441x128xf32>, vector<16x128xf32> -> vector<16x128xf32>
    %c0_3 = arith.constant 0 : index
    %c0_4 = arith.constant 0 : index
    %3 = vector.load %arg3[%c0_3, %c0_4] : memref<16x1xf32, #tpu.memory_space<vmem>>, vector<16x1xf32>
    %4 = vector.broadcast %3 : vector<16x1xf32> to vector<16x128xf32>
    %5 = arith.addf %2, %4 : vector<16x128xf32>
    %cst_5 = arith.constant 0.000000e+00 : f32
    %6 = vector.broadcast %cst_5 : f32 to vector<16x128xf32>
    %7 = arith.maximumf %5, %6 : vector<16x128xf32>
    %c0_6 = arith.constant 0 : index
    %c0_7 = arith.constant 0 : index
    %8 = vector.load %arg6[%c0_6, %c0_7] : memref<16x128xf32, #tpu.memory_space<vmem>>, vector<16x128xf32>
    tpu.vector_store %arg6[%c0_6, %c0_7], %7 {strides = array<i32>} : memref<16x128xf32, #tpu.memory_space<vmem>>, vector<16x128xf32>,
    %c0_8 = arith.constant 0 : index
    %c0_9 = arith.constant 0 : index
    %9 = vector.load %arg4[%c0_8, %c0_9] : memref<1x16xf32, #tpu.memory_space<vmem>>, vector<1x16xf32>
    %cst_10 = arith.constant dense<0.000000e+00> : vector<1x128xf32>
    %10 = tpu.matmul %9, %7, %cst_10 {dimension_numbers = #tpu.dot_dimension_numbers<[1], [0], [0], [1], [0, 0, 1, 1], [], []>} : vector<1x16xf32>, vector<16x128xf32>, vector<1x128xf32> -> vector<1x128xf32>
    %c0_11 = arith.constant 0 : index
    %c0_12 = arith.constant 0 : index
    %11 = vector.load %arg5[%c0_11, %c0_12] : memref<1x1xf32, #tpu.memory_space<vmem>>, vector<1x1xf32>
    %12 = vector.broadcast %11 : vector<1x1xf32> to vector<1x128xf32>
    %13 = arith.addf %10, %12 : vector<1x128xf32>
    %c0_13 = arith.constant 0 : index
    %c0_14 = arith.constant 0 : index
    %14 = vector.load %arg7[%c0_13, %c0_14] : memref<1x128xf32, #tpu.memory_space<vmem>>, vector<1x128xf32>
    tpu.vector_store %arg7[%c0_13, %c0_14], %13 {strides = array<i32>} : memref<1x128xf32, #tpu.memory_space<vmem>>, vector<1x128xf32>,
    %15 = arith.negf %13 : vector<1x128xf32>
    %16 = math.exp %15 : vector<1x128xf32>
    %cst_15 = arith.constant 1.000000e+00 : f32
    %17 = vector.broadcast %cst_15 : f32 to vector<1x128xf32>
    %18 = arith.addf %17, %16 : vector<1x128xf32>
    %19 = arith.divf %17, %18 : vector<1x128xf32>
    %c0_16 = arith.constant 0 : index
    %c0_17 = arith.constant 0 : index
    %20 = vector.load %arg8[%c0_16, %c0_17] : memref<1x128xf32, #tpu.memory_space<vmem>>, vector<1x128xf32>
    tpu.vector_store %arg8[%c0_16, %c0_17], %19 {strides = array<i32>} : memref<1x128xf32, #tpu.memory_space<vmem>>, vector<1x128xf32>,
    return
  }
  func.func @transform_0(%arg0: i32) -> (i32, i32) {
    %c0_i32 = arith.constant 0 : i32
    %c0_i32_0 = arith.constant 0 : i32
    return %c0_i32, %arg0 : i32, i32
  }
  func.func @transform_1(%arg0: i32) -> (i32, i32) {
    %c0_i32 = arith.constant 0 : i32
    %c0_i32_0 = arith.constant 0 : i32
    %c0_i32_1 = arith.constant 0 : i32
    return %c0_i32, %c0_i32_0 : i32, i32
  }
  func.func @transform_2(%arg0: i32) -> (i32, i32) {
    %c0_i32 = arith.constant 0 : i32
    %c0_i32_0 = arith.constant 0 : i32
    %c0_i32_1 = arith.constant 0 : i32
    return %c0_i32, %c0_i32_0 : i32, i32
  }
  func.func @transform_3(%arg0: i32) -> (i32, i32) {
    %c0_i32 = arith.constant 0 : i32
    %c0_i32_0 = arith.constant 0 : i32
    %c0_i32_1 = arith.constant 0 : i32
    return %c0_i32, %c0_i32_0 : i32, i32
  }
  func.func @transform_4(%arg0: i32) -> (i32, i32) {
    %c0_i32 = arith.constant 0 : i32
    %c0_i32_0 = arith.constant 0 : i32
    %c0_i32_1 = arith.constant 0 : i32
    return %c0_i32, %c0_i32_0 : i32, i32
  }
  func.func @transform_5(%arg0: i32) -> (i32, i32) {
    %c0_i32 = arith.constant 0 : i32
    %c0_i32_0 = arith.constant 0 : i32
    return %c0_i32, %arg0 : i32, i32
  }
  func.func @transform_6(%arg0: i32) -> (i32, i32) {
    %c0_i32 = arith.constant 0 : i32
    %c0_i32_0 = arith.constant 0 : i32
    return %c0_i32, %arg0 : i32, i32
  }
  func.func @transform_7(%arg0: i32) -> (i32, i32) {
    %c0_i32 = arith.constant 0 : i32
    %c0_i32_0 = arith.constant 0 : i32
    return %c0_i32, %arg0 : i32, i32
  }
}

module attributes {stable_mosaic.version = 11 : i64} {
  func.func @_conv_relu_pred_kernel(%arg0: i32, %arg1: memref<225x256xf32, #tpu.memory_space<vmem>>, %arg2: memref<8x225xf32, #tpu.memory_space<vmem>>, %arg3: memref<8x1xf32, #tpu.memory_space<vmem>>, %arg4: memref<1x8xf32, #tpu.memory_space<vmem>>, %arg5: memref<1x1xf32, #tpu.memory_space<vmem>>, %arg6: memref<8x256xf32, #tpu.memory_space<vmem>>, %arg7: memref<1x256xf32, #tpu.memory_space<vmem>>, %arg8: memref<1x256xf32, #tpu.memory_space<vmem>>) attributes {dimension_semantics = [#tpu.dimension_semantics<parallel>], iteration_bounds = array<i64: 2>, scalar_prefetch = 0 : i64, scratch_operands = 0 : i64, tpu.core_type = #tpu.core_type<tc>, window_params = [{transform_indices = @transform_0, window_bounds = array<i64: 225, 256>}, {pipeline_mode = #tpu.pipeline_mode<synchronous>, transform_indices = @transform_1, window_bounds = array<i64: 8, 225>}, {pipeline_mode = #tpu.pipeline_mode<synchronous>, transform_indices = @transform_2, window_bounds = array<i64: 8, 1>}, {pipeline_mode = #tpu.pipeline_mode<synchronous>, transform_indices = @transform_3, window_bounds = array<i64: 1, 8>}, {pipeline_mode = #tpu.pipeline_mode<synchronous>, transform_indices = @transform_4, window_bounds = array<i64: 1, 1>}, {transform_indices = @transform_5, window_bounds = array<i64: 8, 256>}, {transform_indices = @transform_6, window_bounds = array<i64: 1, 256>}, {transform_indices = @transform_7, window_bounds = array<i64: 1, 256>}]} {
    %c0 = arith.constant 0 : index
    %c0_0 = arith.constant 0 : index
    %0 = vector.load %arg2[%c0, %c0_0] : memref<8x225xf32, #tpu.memory_space<vmem>>, vector<8x225xf32>
    %c0_1 = arith.constant 0 : index
    %c0_2 = arith.constant 0 : index
    %1 = vector.load %arg1[%c0_1, %c0_2] : memref<225x256xf32, #tpu.memory_space<vmem>>, vector<225x256xf32>
    %cst = arith.constant dense<0.000000e+00> : vector<8x256xf32>
    %2 = tpu.matmul %0, %1, %cst {dimension_numbers = #tpu.dot_dimension_numbers<[1], [0], [0], [1], [0, 0, 1, 1], [], []>} : vector<8x225xf32>, vector<225x256xf32>, vector<8x256xf32> -> vector<8x256xf32>
    %c0_3 = arith.constant 0 : index
    %c0_4 = arith.constant 0 : index
    %3 = vector.load %arg3[%c0_3, %c0_4] : memref<8x1xf32, #tpu.memory_space<vmem>>, vector<8x1xf32>
    %4 = vector.broadcast %3 : vector<8x1xf32> to vector<8x256xf32>
    %5 = arith.addf %2, %4 : vector<8x256xf32>
    %cst_5 = arith.constant 0.000000e+00 : f32
    %6 = vector.broadcast %cst_5 : f32 to vector<8x256xf32>
    %7 = arith.maximumf %5, %6 : vector<8x256xf32>
    %c0_6 = arith.constant 0 : index
    %c0_7 = arith.constant 0 : index
    %8 = vector.load %arg6[%c0_6, %c0_7] : memref<8x256xf32, #tpu.memory_space<vmem>>, vector<8x256xf32>
    tpu.vector_store %arg6[%c0_6, %c0_7], %7 {strides = array<i32>} : memref<8x256xf32, #tpu.memory_space<vmem>>, vector<8x256xf32>,
    %c0_8 = arith.constant 0 : index
    %c0_9 = arith.constant 0 : index
    %9 = vector.load %arg4[%c0_8, %c0_9] : memref<1x8xf32, #tpu.memory_space<vmem>>, vector<1x8xf32>
    %cst_10 = arith.constant dense<0.000000e+00> : vector<1x256xf32>
    %10 = tpu.matmul %9, %7, %cst_10 {dimension_numbers = #tpu.dot_dimension_numbers<[1], [0], [0], [1], [0, 0, 1, 1], [], []>} : vector<1x8xf32>, vector<8x256xf32>, vector<1x256xf32> -> vector<1x256xf32>
    %c0_11 = arith.constant 0 : index
    %c0_12 = arith.constant 0 : index
    %11 = vector.load %arg5[%c0_11, %c0_12] : memref<1x1xf32, #tpu.memory_space<vmem>>, vector<1x1xf32>
    %12 = vector.broadcast %11 : vector<1x1xf32> to vector<1x256xf32>
    %13 = arith.addf %10, %12 : vector<1x256xf32>
    %c0_13 = arith.constant 0 : index
    %c0_14 = arith.constant 0 : index
    %14 = vector.load %arg7[%c0_13, %c0_14] : memref<1x256xf32, #tpu.memory_space<vmem>>, vector<1x256xf32>
    tpu.vector_store %arg7[%c0_13, %c0_14], %13 {strides = array<i32>} : memref<1x256xf32, #tpu.memory_space<vmem>>, vector<1x256xf32>,
    %15 = arith.negf %13 : vector<1x256xf32>
    %16 = math.exp %15 : vector<1x256xf32>
    %cst_15 = arith.constant 1.000000e+00 : f32
    %17 = vector.broadcast %cst_15 : f32 to vector<1x256xf32>
    %18 = arith.addf %17, %16 : vector<1x256xf32>
    %19 = arith.divf %17, %18 : vector<1x256xf32>
    %c0_16 = arith.constant 0 : index
    %c0_17 = arith.constant 0 : index
    %20 = vector.load %arg8[%c0_16, %c0_17] : memref<1x256xf32, #tpu.memory_space<vmem>>, vector<1x256xf32>
    tpu.vector_store %arg8[%c0_16, %c0_17], %19 {strides = array<i32>} : memref<1x256xf32, #tpu.memory_space<vmem>>, vector<1x256xf32>,
    return
  }
  func.func @transform_0(%arg0: i32) -> (i32, i32) {
    %c0_i32 = arith.constant 0 : i32
    %c0_i32_0 = arith.constant 0 : i32
    return %c0_i32, %arg0 : i32, i32
  }
  func.func @transform_1(%arg0: i32) -> (i32, i32) {
    %c0_i32 = arith.constant 0 : i32
    %c0_i32_0 = arith.constant 0 : i32
    %c0_i32_1 = arith.constant 0 : i32
    return %c0_i32, %c0_i32_0 : i32, i32
  }
  func.func @transform_2(%arg0: i32) -> (i32, i32) {
    %c0_i32 = arith.constant 0 : i32
    %c0_i32_0 = arith.constant 0 : i32
    %c0_i32_1 = arith.constant 0 : i32
    return %c0_i32, %c0_i32_0 : i32, i32
  }
  func.func @transform_3(%arg0: i32) -> (i32, i32) {
    %c0_i32 = arith.constant 0 : i32
    %c0_i32_0 = arith.constant 0 : i32
    %c0_i32_1 = arith.constant 0 : i32
    return %c0_i32, %c0_i32_0 : i32, i32
  }
  func.func @transform_4(%arg0: i32) -> (i32, i32) {
    %c0_i32 = arith.constant 0 : i32
    %c0_i32_0 = arith.constant 0 : i32
    %c0_i32_1 = arith.constant 0 : i32
    return %c0_i32, %c0_i32_0 : i32, i32
  }
  func.func @transform_5(%arg0: i32) -> (i32, i32) {
    %c0_i32 = arith.constant 0 : i32
    %c0_i32_0 = arith.constant 0 : i32
    return %c0_i32, %arg0 : i32, i32
  }
  func.func @transform_6(%arg0: i32) -> (i32, i32) {
    %c0_i32 = arith.constant 0 : i32
    %c0_i32_0 = arith.constant 0 : i32
    return %c0_i32, %arg0 : i32, i32
  }
  func.func @transform_7(%arg0: i32) -> (i32, i32) {
    %c0_i32 = arith.constant 0 : i32
    %c0_i32_0 = arith.constant 0 : i32
    return %c0_i32, %arg0 : i32, i32
  }
}

</mosaic_0001>

<llo_original>
// kernel: unet_multiscale_forward.5
$region0: #{unet_multiscale_forward.5}
  #allocation0 [shape = 'u32[]', space=smem, size = 0x4, offset = 0x4, fixed_abs, tag = 'smem constant byte address 0x4 - core index']
  #allocation1 [shape = 'u32[144,128]{1,0:T(1,128)}', space=vmem, size = 0x12000, scoped, tag = 'internal scratch']
  %s0 = inlined_call_operand.vmem [shape: f32[36,512], index: 0, kind: input, shape index: {}]
  %s1 = inlined_call_operand.vmem [shape: f32[8,36], index: 1, kind: input, shape index: {}]
  %s2 = inlined_call_operand.vmem [shape: f32[8,1], index: 2, kind: input, shape index: {}]
  %s3 = inlined_call_operand.vmem [shape: f32[8,512], index: 3, kind: output, shape index: {}]
  %s4 = sld [smem:[#allocation0]]
  $region68: #{unet_multiscale_forward.5} parent=0
    _
  %s6 = ssub.s32 1, %s4
  %s7 = scalar_select 0, %s6, %s4
  $region1: #{unet_multiscale_forward.5} parent=0
    #allocation2 [shape = 'u8[81920]{0}', space=vmem, size = 0x14000, scoped, tag = 'input window, operand 0']
    loop: start=0, step=1, limit=4
    $region2: #{unet_multiscale_forward.5} parent=1 // loop_pre_header
      _
    $region3: #{unet_multiscale_forward.5} parent=1 // loop_header
      %s9 = sphi 0, %s13
      %p10 = scmp.ge.s32.totalorder %s9, 4
      %s19 = sphi 0, %s21
      %s22 = sphi 0, %s19
      %s23 = sphi 0, %s22
      %s39 = sphi 0, %s23
      %s43 = sphi 0, %s43
      %s45 = sphi 0, %s43
      %s46 = sphi 0, %s45
      %s60 = sphi 0, %s46
      %s64 = sphi 0, %s64
      %s66 = sphi 0, %s64
      %s67 = sphi 0, %s66
      %s81 = sphi 0, %s67
      %s87 = sphi 0, %s89
      %s90 = sphi 0, %s87
      %s91 = sphi 0, %s90
      %s107 = sphi 0, %s91
    $region4: #{unet_multiscale_forward.5} parent=1 // loop_header_branch
      %12 = sbr.rel (%p10) target = $region8
    $region5: #{unet_multiscale_forward.5} parent=1 // loop_body
      %s14 = ssub.s32 %s9, 1
      %s15 = ssub.s32 %s9, 2
      %s16 = sadd.s32 %s9, 1
      %s17 = ssub.s32 %s9, %s16
      %p18 = scmp.eq.s32.totalorder %s17, 0
      %s20 = sadd.s32 %s19, 1
      %s21 = scalar_select %p18, %s19, %s20
      %p24 = pneg %p18
      %p25 = scmp.eq.s32.totalorder %s9, 1
      %p26 = por %p24, %p25
      %p27 = scmp.ne.s32.totalorder %s19, %s22
      %p28 = scmp.eq.s32.totalorder %s9, 0
      %p29 = por %p27, %p28
      %p30 = scmp.ne.s32.totalorder %s19, %s22
      %p31 = scmp.eq.s32.totalorder %s14, 1
      %p32 = por %p30, %p31
      %p33 = scmp.ne.s32.totalorder %s22, %s23
      %p34 = scmp.eq.s32.totalorder %s14, 0
      %p35 = por %p33, %p34
      %p36 = scmp.ne.s32.totalorder %s22, %s23
      %p37 = scmp.eq.s32.totalorder %s15, 1
      %p38 = por %p36, %p37
      %p40 = scmp.ne.s32.totalorder %s23, %s39
      %p41 = scmp.eq.s32.totalorder %s15, 0
      %p42 = por %p40, %p41
      %s44 = sadd.s32 %s43, 1
      %p47 = scmp.eq.s32.totalorder %s9, 1
      %p48 = scmp.ne.s32.totalorder %s43, %s45
      %p49 = scmp.eq.s32.totalorder %s9, 0
      %p50 = por %p48, %p49
      %p51 = scmp.ne.s32.totalorder %s43, %s45
      %p52 = scmp.eq.s32.totalorder %s14, 1
      %p53 = por %p51, %p52
      %p54 = scmp.ne.s32.totalorder %s45, %s46
      %p55 = scmp.eq.s32.totalorder %s14, 0
      %p56 = por %p54, %p55
      %p57 = scmp.ne.s32.totalorder %s45, %s46
      %p58 = scmp.eq.s32.totalorder %s15, 1
      %p59 = por %p57, %p58
      %p61 = scmp.ne.s32.totalorder %s46, %s60
      %p62 = scmp.eq.s32.totalorder %s15, 0
      %p63 = por %p61, %p62
      %s65 = sadd.s32 %s64, 1
      %p68 = scmp.eq.s32.totalorder %s9, 1
      %p69 = scmp.ne.s32.totalorder %s64, %s66
      %p70 = scmp.eq.s32.totalorder %s9, 0
      %p71 = por %p69, %p70
      %p72 = scmp.ne.s32.totalorder %s64, %s66
      %p73 = scmp.eq.s32.totalorder %s14, 1
      %p74 = por %p72, %p73
      %p75 = scmp.ne.s32.totalorder %s66, %s67
      %p76 = scmp.eq.s32.totalorder %s14, 0
      %p77 = por %p75, %p76
      %p78 = scmp.ne.s32.totalorder %s66, %s67
      %p79 = scmp.eq.s32.totalorder %s15, 1
      %p80 = por %p78, %p79
      %p82 = scmp.ne.s32.totalorder %s67, %s81
      %p83 = scmp.eq.s32.totalorder %s15, 0
      %p84 = por %p82, %p83
      %s85 = ssub.s32 %s9, %s16
      %p86 = scmp.eq.s32.totalorder %s85, 0
      %s88 = sadd.s32 %s87, 1
      %s89 = scalar_select %p86, %s87, %s88
      %p92 = pneg %p86
      %p93 = scmp.eq.s32.totalorder %s9, 1
      %p94 = por %p92, %p93
      %p95 = scmp.ne.s32.totalorder %s87, %s90
      %p96 = scmp.eq.s32.totalorder %s9, 0
      %p97 = por %p95, %p96
      %p98 = scmp.ne.s32.totalorder %s87, %s90
      %p99 = scmp.eq.s32.totalorder %s14, 1
      %p100 = por %p98, %p99
      %p101 = scmp.ne.s32.totalorder %s90, %s91
      %p102 = scmp.eq.s32.totalorder %s14, 0
      %p103 = por %p101, %p102
      %p104 = scmp.ne.s32.totalorder %s90, %s91
      %p105 = scmp.eq.s32.totalorder %s15, 1
      %p106 = por %p104, %p105
      %p108 = scmp.ne.s32.totalorder %s91, %s107
      %p109 = scmp.eq.s32.totalorder %s15, 0
      %p110 = por %p108, %p109
      %p111 = scmp.le.s32.totalorder 1, %s9
      %p112 = scmp.lt.s32.totalorder %s9, 3
      %p113 = pnand %p111, %p112
      %p114 = pneg %p113
      // Predicated region
      $region9: #{unet_multiscale_forward.5} parent=5 // pred_check
        _
      $region10: #{unet_multiscale_forward.5} parent=5 // pred_check_branch
        %116 = sbr.rel (%p113) target = $region12
      $region11: #{unet_multiscale_forward.5} parent=5 // pred_region
        %s117 = ssub.s32 %s9, 1
        // Predicated region
        $region13: #{unet_multiscale_forward.5} parent=11 // pred_check
          %p118 = pneg %p56
        $region14: #{unet_multiscale_forward.5} parent=11 // pred_check_branch
          %120 = sbr.rel (%p118) target = $region16
        $region15: #{unet_multiscale_forward.5} parent=11 // pred_region
          _
        $region16: #{unet_multiscale_forward.5} parent=11 // pred_fallthru
          _
        // Predicated region
        $region17: #{unet_multiscale_forward.5} parent=11 // pred_check
          %p121 = pneg %p77
        $region18: #{unet_multiscale_forward.5} parent=11 // pred_check_branch
          %123 = sbr.rel (%p121) target = $region20
        $region19: #{unet_multiscale_forward.5} parent=11 // pred_region
          _
        $region20: #{unet_multiscale_forward.5} parent=11 // pred_fallthru
          _
      $region12: #{unet_multiscale_forward.5} parent=5 // pred_fallthru
        _
      %p124 = scmp.lt.s32.totalorder %s9, 2
      // Predicated region
      $region21: #{unet_multiscale_forward.5} parent=5 // pred_check
        %p125 = pneg %p124
      $region22: #{unet_multiscale_forward.5} parent=5 // pred_check_branch
        %127 = sbr.rel (%p125) target = $region24
      $region23: #{unet_multiscale_forward.5} parent=5 // pred_region
        // Predicated region
        $region25: #{unet_multiscale_forward.5} parent=23 // pred_check
          %p128 = pneg %p29
        $region26: #{unet_multiscale_forward.5} parent=23 // pred_check_branch
          %130 = sbr.rel (%p128) target = $region28
        $region27: #{unet_multiscale_forward.5} parent=23 // pred_region
          %s131 = sand.u32 %s19, 1
          %s132 = sand.u32 %s19, 1
          %s133 = smul.addr %s132, 80
          %s134 = scalar_lea.vmem [#allocation2], %s133
          %s135 = smul.u32 2, %s9
          %s136 = smul.addr %s135, 8
          %s137 = scalar_lea.vmem %s0, %s136
          // Predicated region
          $region29: #{unet_multiscale_forward.5} parent=27 // pred_check
            _
          $region30: #{unet_multiscale_forward.5} parent=27 // pred_check_branch
            %139 = sbr.rel (0) target = $region32
          $region31: #{unet_multiscale_forward.5} parent=27 // pred_region
            // Predicated region
            $region33: #{unet_multiscale_forward.5} parent=31 // pred_check
              _
            $region34: #{unet_multiscale_forward.5} parent=31 // pred_check_branch
              %141 = sbr.rel (0) target = $region36
            $region35: #{unet_multiscale_forward.5} parent=31 // pred_region
              loop: start=0, step=1, limit=1
              $region37: #{unet_multiscale_forward.5} parent=35 // loop_pre_header
                _
              $region38: #{unet_multiscale_forward.5} parent=35 // loop_header
                %s143 = sphi 0, %s147
                %p144 = scmp.ge.s32.totalorder %s143, 1
                %s148 = sphi %s137, %s137
                %s149 = sphi %s134, %s134
              $region39: #{unet_multiscale_forward.5} parent=35 // loop_header_branch
                %146 = sbr.rel (%p144) target = $region43
              $region40: #{unet_multiscale_forward.5} parent=35 // loop_body
                %v150 = vld [vmem:[%s148] sm:$0xff]
                %151 = vst [vmem:[%s149] sm:$0xff] %v150
                %v152 = vld [vmem:[%s148 + $0x8] sm:$0xff]
                %153 = vst [vmem:[%s149 + $0x8] sm:$0xff] %v152
                %v154 = vld [vmem:[%s148 + $0x20] sm:$0xff]
                %155 = vst [vmem:[%s149 + $0x10] sm:$0xff] %v154
                %v156 = vld [vmem:[%s148 + $0x28] sm:$0xff]
                %157 = vst [vmem:[%s149 + $0x18] sm:$0xff] %v156
                %v158 = vld [vmem:[%s148 + $0x40] sm:$0xff]
                %159 = vst [vmem:[%s149 + $0x20] sm:$0xff] %v158
                %v160 = vld [vmem:[%s148 + $0x48] sm:$0xff]
                %161 = vst [vmem:[%s149 + $0x28] sm:$0xff] %v160
                %v162 = vld [vmem:[%s148 + $0x60] sm:$0xff]
                %163 = vst [vmem:[%s149 + $0x30] sm:$0xff] %v162
                %v164 = vld [vmem:[%s148 + $0x68] sm:$0xff]
                %165 = vst [vmem:[%s149 + $0x38] sm:$0xff] %v164
                %v166 = vld [vmem:[%s148 + $0x80] sm:$0xff]
                %167 = vst [vmem:[%s149 + $0x40] sm:$0xff] %v166
                %v168 = vld [vmem:[%s148 + $0x88] sm:$0xff]
                %169 = vst [vmem:[%s149 + $0x48] sm:$0xff] %v168
              $region41: #{unet_multiscale_forward.5} parent=35 // loop_footer
                %s147 = sadd.s32 1, %s143
              $region42: #{unet_multiscale_forward.5} parent=35 // loop_footer_branch
                %142 = sbr.rel target = $region38
              $region43: #{unet_multiscale_forward.5} parent=35 // loop_exit
                _
            $region36: #{unet_multiscale_forward.5} parent=31 // pred_fallthru
              _
            // Predicated region
            $region44: #{unet_multiscale_forward.5} parent=31 // pred_check
              _
            $region45: #{unet_multiscale_forward.5} parent=31 // pred_check_branch
              %171 = sbr.rel target = $region47
            $region46: #{unet_multiscale_forward.5} parent=31 // pred_region
              _
            $region47: #{unet_multiscale_forward.5} parent=31 // pred_fallthru
              _
          $region32: #{unet_multiscale_forward.5} parent=27 // pred_fallthru
            _
          %172 = vnop
        $region28: #{unet_multiscale_forward.5} parent=23 // pred_fallthru
          _
      $region24: #{unet_multiscale_forward.5} parent=5 // pred_fallthru
        _
      %p173 = scmp.le.s32.totalorder 1, %s9
      %p174 = scmp.lt.s32.totalorder %s9, 3
      %p175 = pnand %p173, %p174
      %p176 = pneg %p175
      // Predicated region
      $region48: #{unet_multiscale_forward.5} parent=5 // pred_check
        _
      $region49: #{unet_multiscale_forward.5} parent=5 // pred_check_branch
        %178 = sbr.rel (%p175) target = $region51
      $region50: #{unet_multiscale_forward.5} parent=5 // pred_region
        %s179 = ssub.s32 %s9, 1
        %s180 = sand.u32 %s22, 1
        %s181 = sand.u32 %s22, 1
        %s182 = smul.addr %s181, 80
        %s183 = scalar_lea.vmem [#allocation2], %s182
        // Predicated region
        $region52: #{unet_multiscale_forward.5} parent=50 // pred_check
          %p184 = pneg %p35
        $region53: #{unet_multiscale_forward.5} parent=50 // pred_check_branch
          %186 = sbr.rel (%p184) target = $region55
        $region54: #{unet_multiscale_forward.5} parent=50 // pred_region
          _
        $region55: #{unet_multiscale_forward.5} parent=50 // pred_fallthru
          _
        %s187 = sand.u32 %s22, 1
        %s188 = sand.u32 %s22, 1
        %s189 = smul.addr %s188, 80
        %s190 = scalar_lea.vmem [#allocation2], %s189
        %p191 = pneg %p35
        %p192 = pneg %p32
        %p193 = pneg %p56
        %p194 = pneg %p53
        %p195 = pneg %p77
        %p196 = pneg %p74
        %p197 = pneg %p103
        %p198 = pneg %p100
        %s199 = smul.u32 2, %s14
        %p200 = scmp.lt.s32.totalorder %s199, 3
        %s201 = scalar_select %p200, %s199, 3
        %s202 = smul.addr %s201, 8
        %s203 = scalar_lea.vmem %s3, %s202
        %s204 = smul.u32 2, %s14
        %s205 = smul.u32 2, %s14
        %p206 = scmp.lt.s32.totalorder %s205, 3
        %s207 = scalar_select %p206, %s205, 3
        %s208 = smul.addr %s207, 8
        %s209 = scalar_lea.vmem %s3, %s208
        %s210 = smul.u32 2, %s14
        %v211 = vld [vmem:[%s1] sm:$0xff]
        %v212 = vld [vmem:[%s183] sm:$0xff]
        %v213 = vld [vmem:[%s183 + $0x8] sm:$0xff]
        %v214 = vld [vmem:[%s183 + $0x10] sm:$0xff]
        %v215 = vld [vmem:[%s183 + $0x18] sm:$0xff]
        %v216 = vld [vmem:[%s183 + $0x20] sm:$0xff]
        %v217 = vld [vmem:[%s183 + $0x28] sm:$0xff]
        %v218 = vld [vmem:[%s183 + $0x30] sm:$0xff]
        %v219 = vld [vmem:[%s183 + $0x38] sm:$0xff]
        %v220 = vld [vmem:[%s183 + $0x40] sm:$0xf]
        %v221 = vld [vmem:[%s183 + $0x48] sm:$0xf]
        %v222 = vld [vmem:[%s2] sm:$0xff]
        %224 = vset.pattern.permute.xlu0 0
        %225 = vperm.xlu0 %224, %v222
        %v226 = vpop.permute.xlu0 %225
        %vm228 = vcmask 293888
        %v230 = vsel %vm228, %v211, 0
        %vm232 = vcmask 1043456
        %v234 = vsel %vm232, %v220, 0
        %v237 = vsel %vm232, %v221, 0
        %239 = vmatprep.subr.mxu0 %v213
        %240 = vmatpush1.msra.mxu0 %v212
        %241 = vmatprep.subr.mxu0 %v215
        %242 = vmatpush1.msra.mxu0 %v214
        %243 = vmatprep.subr.mxu0 %v217
        %244 = vmatpush1.msra.mxu0 %v216
        %245 = vmatprep.subr.mxu0 %v219
        %246 = vmatpush1.msra.mxu0 %v218
        %247 = vmatprep.subr.mxu0 %v237
        %248 = vmatpush1.msra.mxu0 %v234
        %249 = vmatprep.subr.mxu0 0.0
        %250 = vmatpush1.msra.mxu0 0.0
        %251 = vmatprep.subr.mxu0 0.0
        %252 = vmatpush1.msra.mxu0 0.0
        %253 = vmatprep.subr.mxu0 0.0
        %254 = vmatpush1.msra.mxu0 0.0
        %255 = vmatprep.subr.mxu0 0.0
        %256 = vmatpush1.msra.mxu0 0.0
        %257 = vmatprep.subr.mxu0 0.0
        %258 = vmatpush1.msra.mxu0 0.0
        %259 = vmatprep.subr.mxu0 0.0
        %260 = vmatpush1.msra.mxu0 0.0
        %261 = vmatprep.subr.mxu0 0.0
        %262 = vmatpush1.msra.mxu0 0.0
        %263 = vmatprep.subr.mxu0 0.0
        %264 = vmatpush1.msra.mxu0 0.0
        %265 = vmatprep.subr.mxu0 0.0
        %266 = vmatpush1.msra.mxu0 0.0
        %267 = vmatprep.subr.mxu0 0.0
        %268 = vmatpush1.msra.mxu0 0.0
        %269 = vmatprep.subr.mxu0 0.0
        %270 = vmatpush1.msra.mxu0 0.0
        %271 = vmatprep.subr.mxu0 0.0
        %272 = vmatpush1.msra.mxu0 0.0
        %273 = vmatprep.subr.mxu0 0.0
        %274 = vmatpush1.msra.mxu0 0.0
        %275 = vmatprep.subr.mxu0 0.0
        %276 = vmatpush1.msra.mxu0 0.0
        %277 = vmatprep.subr.mxu0 0.0
        %278 = vmatpush1.msra.mxu0 0.0
        %279 = vmatprep.subr.mxu0 0.0
        %280 = vmatpush1.msra.mxu0 0.0
        %281 = vmatprep.subr.mxu0 0.0
        %282 = vmatpush1.msra.mxu0 0.0
        %283 = vmatprep.subr.mxu0 0.0
        %284 = vmatpush1.msra.mxu0 0.0
        %285 = vmatprep.subr.mxu0 0.0
        %286 = vmatpush1.msra.mxu0 0.0
        %287 = vmatprep.subr.mxu0 0.0
        %288 = vmatpush1.msra.mxu0 0.0
        %289 = vmatprep.subr.mxu0 0.0
        %290 = vmatpush1.msra.mxu0 0.0
        %291 = vmatprep.subr.mxu0 0.0
        %292 = vmatpush1.msra.mxu0 0.0
        %293 = vmatprep.subr.mxu0 0.0
        %294 = vmatpush1.msra.mxu0 0.0
        %295 = vmatprep.subr.mxu0 0.0
        %296 = vmatpush1.msra.mxu0 0.0
        %297 = vmatprep.subr.mxu0 0.0
        %298 = vmatpush1.msra.mxu0 0.0
        %299 = vmatprep.subr.mxu0 0.0
        %300 = vmatpush1.msra.mxu0 0.0
        %301 = vmatprep.subr.mxu0 0.0
        %302 = vmatpush1.msra.mxu0 0.0
        %303 = vmatprep.mubr.f32.mxu0 0.0
        %304 = vmatmul.mubr.f32.gmra.mrb[0].mxu0 %v230
        %v305 = vpop.f32.mrb[0].mxu0
        %v306 = vadd.f32 %v226, %v305
        %v307 = vpop.f32.mrb[0].mxu0
        %v308 = vadd.f32 %v226, %v307
        %309 = vdwg.mxu0
        %v310 = vmax.f32 %v306, 0.0
        %v311 = vmax.f32 %v308, 0.0
        %312 = vst [vmem:[%s209] sm:$0xff] %v310
        %313 = vst [vmem:[%s209 + $0x8] sm:$0xff] %v311
        %s314 = smul.u32 2, %s14
        %p315 = scmp.lt.s32.totalorder %s314, 3
        %s316 = scalar_select %p315, %s314, 3
        %s317 = smul.addr %s316, 8
        %s318 = scalar_lea.vmem %s3, %s317
        // Predicated region
        $region56: #{unet_multiscale_forward.5} parent=50 // pred_check
          %p319 = pneg %p100
        $region57: #{unet_multiscale_forward.5} parent=50 // pred_check_branch
          %321 = sbr.rel (%p319) target = $region59
        $region58: #{unet_multiscale_forward.5} parent=50 // pred_region
          %s322 = smul.u32 2, %s14
        $region59: #{unet_multiscale_forward.5} parent=50 // pred_fallthru
          _
      $region51: #{unet_multiscale_forward.5} parent=5 // pred_fallthru
        _
      %p323 = scmp.le.s32.totalorder 2, %s9
      // Predicated region
      $region60: #{unet_multiscale_forward.5} parent=5 // pred_check
        %p324 = pneg %p323
      $region61: #{unet_multiscale_forward.5} parent=5 // pred_check_branch
        %326 = sbr.rel (%p324) target = $region63
      $region62: #{unet_multiscale_forward.5} parent=5 // pred_region
        %s327 = ssub.s32 %s9, 2
        // Predicated region
        $region64: #{unet_multiscale_forward.5} parent=62 // pred_check
          %p328 = pneg %p106
        $region65: #{unet_multiscale_forward.5} parent=62 // pred_check_branch
          %330 = sbr.rel (%p328) target = $region67
        $region66: #{unet_multiscale_forward.5} parent=62 // pred_region
          %s331 = smul.u32 2, %s15
          %p332 = scmp.lt.s32.totalorder %s331, 3
          %s333 = scalar_select %p332, %s331, 3
          %s334 = smul.addr %s333, 8
          %s335 = scalar_lea.vmem %s3, %s334
        $region67: #{unet_multiscale_forward.5} parent=62 // pred_fallthru
          _
      $region63: #{unet_multiscale_forward.5} parent=5 // pred_fallthru
        _
    $region6: #{unet_multiscale_forward.5} parent=1 // loop_footer
      %s13 = sadd.s32 1, %s9
    $region7: #{unet_multiscale_forward.5} parent=1 // loop_footer_branch
      %8 = sbr.rel target = $region3
    $region8: #{unet_multiscale_forward.5} parent=1 // loop_exit
      _

// kernel: unet_multiscale_forward.6
$region0: #{unet_multiscale_forward.6}
  #allocation0 [shape = 'u32[]', space=smem, size = 0x4, offset = 0x4, fixed_abs, tag = 'smem constant byte address 0x4 - core index']
  #allocation1 [shape = 'u32[144,128]{1,0:T(1,128)}', space=vmem, size = 0x12000, scoped, tag = 'internal scratch']
  %s0 = inlined_call_operand.vmem [shape: f32[72,128], index: 0, kind: input, shape index: {}]
  %s1 = inlined_call_operand.vmem [shape: f32[16,72], index: 1, kind: input, shape index: {}]
  %s2 = inlined_call_operand.vmem [shape: f32[16,1], index: 2, kind: input, shape index: {}]
  %s3 = inlined_call_operand.vmem [shape: f32[16,128], index: 3, kind: output, shape index: {}]
  %s4 = sld [smem:[#allocation0]]
  $region22: #{unet_multiscale_forward.6} parent=0
    _
  %s6 = ssub.s32 1, %s4
  %s7 = scalar_select 0, %s6, %s4
  // Predicated region
  $region2: #{unet_multiscale_forward.6} parent=0 // pred_check
    _
  $region3: #{unet_multiscale_forward.6} parent=0 // pred_check_branch
    %9 = sbr.rel (0) target = $region5
  $region4: #{unet_multiscale_forward.6} parent=0 // pred_region
    _
  $region5: #{unet_multiscale_forward.6} parent=0 // pred_fallthru
    _
  // Predicated region
  $region6: #{unet_multiscale_forward.6} parent=0 // pred_check
    _
  $region7: #{unet_multiscale_forward.6} parent=0 // pred_check_branch
    %11 = sbr.rel (0) target = $region9
  $region8: #{unet_multiscale_forward.6} parent=0 // pred_region
    _
  $region9: #{unet_multiscale_forward.6} parent=0 // pred_fallthru
    _
  // Predicated region
  $region10: #{unet_multiscale_forward.6} parent=0 // pred_check
    _
  $region11: #{unet_multiscale_forward.6} parent=0 // pred_check_branch
    %13 = sbr.rel (0) target = $region13
  $region12: #{unet_multiscale_forward.6} parent=0 // pred_region
    _
  $region13: #{unet_multiscale_forward.6} parent=0 // pred_fallthru
    _
  %v14 = vld [vmem:[%s1] sm:$0xff]
  %v15 = vld [vmem:[%s1 + $0x8] sm:$0xff]
  %v16 = vld [vmem:[%s0] sm:$0xff]
  %v17 = vld [vmem:[%s0 + $0x8] sm:$0xff]
  %v18 = vld [vmem:[%s0 + $0x10] sm:$0xff]
  %v19 = vld [vmem:[%s0 + $0x18] sm:$0xff]
  %v20 = vld [vmem:[%s0 + $0x20] sm:$0xff]
  %v21 = vld [vmem:[%s0 + $0x28] sm:$0xff]
  %v22 = vld [vmem:[%s0 + $0x30] sm:$0xff]
  %v23 = vld [vmem:[%s0 + $0x38] sm:$0xff]
  %v24 = vld [vmem:[%s0 + $0x40] sm:$0xff]
  %v25 = vld [vmem:[%s2] sm:$0xff]
  %v26 = vld [vmem:[%s2 + $0x8] sm:$0xff]
  %28 = vset.pattern.permute.xlu0 0
  %29 = vperm.xlu0 %28, %v25
  %v30 = vpop.permute.xlu0 %29
  %33 = vset.pattern.permute.xlu0 0
  %34 = vperm.xlu0 %33, %v26
  %v35 = vpop.permute.xlu0 %34
  %vm37 = vcmask 588800
  %v39 = vsel %vm37, %v14, 0
  %v42 = vsel %vm37, %v15, 0
  %44 = vmatprep.subr.mxu0 0.0
  %45 = vmatpush1.msra.mxu0 %v16
  %46 = vmatprep.subr.mxu0 0.0
  %47 = vmatpush1.msra.mxu0 %v17
  %48 = vmatprep.subr.mxu0 0.0
  %49 = vmatpush1.msra.mxu0 %v18
  %50 = vmatprep.subr.mxu0 0.0
  %51 = vmatpush1.msra.mxu0 %v19
  %52 = vmatprep.subr.mxu0 0.0
  %53 = vmatpush1.msra.mxu0 %v20
  %54 = vmatprep.subr.mxu0 0.0
  %55 = vmatpush1.msra.mxu0 %v21
  %56 = vmatprep.subr.mxu0 0.0
  %57 = vmatpush1.msra.mxu0 %v22
  %58 = vmatprep.subr.mxu0 0.0
  %59 = vmatpush1.msra.mxu0 %v23
  %60 = vmatprep.subr.mxu0 0.0
  %61 = vmatpush1.msra.mxu0 %v24
  %62 = vmatprep.subr.mxu0 0.0
  %63 = vmatpush1.msra.mxu0 0.0
  %64 = vmatprep.subr.mxu0 0.0
  %65 = vmatpush1.msra.mxu0 0.0
  %66 = vmatprep.subr.mxu0 0.0
  %67 = vmatpush1.msra.mxu0 0.0
  %68 = vmatprep.subr.mxu0 0.0
  %69 = vmatpush1.msra.mxu0 0.0
  %70 = vmatprep.subr.mxu0 0.0
  %71 = vmatpush1.msra.mxu0 0.0
  %72 = vmatprep.subr.mxu0 0.0
  %73 = vmatpush1.msra.mxu0 0.0
  %74 = vmatprep.subr.mxu0 0.0
  %75 = vmatpush1.msra.mxu0 0.0
  %76 = vmatprep.subr.mxu0 0.0
  %77 = vmatpush1.msra.mxu0 0.0
  %78 = vmatprep.subr.mxu0 0.0
  %79 = vmatpush1.msra.mxu0 0.0
  %80 = vmatprep.subr.mxu0 0.0
  %81 = vmatpush1.msra.mxu0 0.0
  %82 = vmatprep.subr.mxu0 0.0
  %83 = vmatpush1.msra.mxu0 0.0
  %84 = vmatprep.subr.mxu0 0.0
  %85 = vmatpush1.msra.mxu0 0.0
  %86 = vmatprep.subr.mxu0 0.0
  %87 = vmatpush1.msra.mxu0 0.0
  %88 = vmatprep.subr.mxu0 0.0
  %89 = vmatpush1.msra.mxu0 0.0
  %90 = vmatprep.subr.mxu0 0.0
  %91 = vmatpush1.msra.mxu0 0.0
  %92 = vmatprep.subr.mxu0 0.0
  %93 = vmatpush1.msra.mxu0 0.0
  %94 = vmatprep.subr.mxu0 0.0
  %95 = vmatpush1.msra.mxu0 0.0
  %96 = vmatprep.subr.mxu0 0.0
  %97 = vmatpush1.msra.mxu0 0.0
  %98 = vmatprep.subr.mxu0 0.0
  %99 = vmatpush1.msra.mxu0 0.0
  %100 = vmatprep.subr.mxu0 0.0
  %101 = vmatpush1.msra.mxu0 0.0
  %102 = vmatprep.subr.mxu0 0.0
  %103 = vmatpush1.msra.mxu0 0.0
  %104 = vmatprep.subr.mxu0 0.0
  %105 = vmatpush1.msra.mxu0 0.0
  %106 = vmatprep.subr.mxu0 0.0
  %107 = vmatpush1.msra.mxu0 0.0
  %108 = vmatprep.mubr.f32.mxu0 0.0
  %109 = vmatmul.mubr.f32.gmra.mrb[0].mxu0 %v39
  %v110 = vpop.f32.mrb[0].mxu0
  %v111 = vadd.f32 %v30, %v110
  %v112 = vpop.f32.mrb[0].mxu0
  %113 = vmatprep.mubr.f32.mxu0 0.0
  %114 = vmatmul.mubr.f32.gmra.mrb[0].mxu0 %v42
  %v115 = vpop.f32.mrb[0].mxu0
  %v116 = vadd.f32 %v35, %v115
  %v117 = vpop.f32.mrb[0].mxu0
  %118 = vdwg.mxu0
  %v119 = vmax.f32 %v111, 0.0
  %v120 = vmax.f32 %v116, 0.0
  %121 = vst [vmem:[%s3] sm:$0xff] %v119
  %122 = vst [vmem:[%s3 + $0x8] sm:$0xff] %v120
  // Predicated region
  $region14: #{unet_multiscale_forward.6} parent=0 // pred_check
    _
  $region15: #{unet_multiscale_forward.6} parent=0 // pred_check_branch
    %124 = sbr.rel (0) target = $region17
  $region16: #{unet_multiscale_forward.6} parent=0 // pred_region
    _
  $region17: #{unet_multiscale_forward.6} parent=0 // pred_fallthru
    _
  // Predicated region
  $region18: #{unet_multiscale_forward.6} parent=0 // pred_check
    _
  $region19: #{unet_multiscale_forward.6} parent=0 // pred_check_branch
    %126 = sbr.rel (0) target = $region21
  $region20: #{unet_multiscale_forward.6} parent=0 // pred_region
    _
  $region21: #{unet_multiscale_forward.6} parent=0 // pred_fallthru
    _

// kernel: unet_multiscale_forward.7
$region0: #{unet_multiscale_forward.7}
  #allocation0 [shape = 'u32[]', space=smem, size = 0x4, offset = 0x4, fixed_abs, tag = 'smem constant byte address 0x4 - core index']
  #allocation1 [shape = 'u32[144,128]{1,0:T(1,128)}', space=vmem, size = 0x12000, scoped, tag = 'internal scratch']
  #allocation2 [shape = 'f32[1,1]{1,0:T(1,128)S(1)}', space=vmem, size = 0x200, scoped, tag = 'scoped memory for unet_multiscale_forward.7']
  %s0 = inlined_call_operand.vmem [shape: f32[144,32], index: 0, kind: input, shape index: {}]
  %s1 = inlined_call_operand.vmem [shape: f32[32,144], index: 1, kind: input, shape index: {}]
  %s2 = inlined_call_operand.vmem [shape: f32[32,1], index: 2, kind: input, shape index: {}]
  %s3 = inlined_call_operand.vmem [shape: f32[1,32], index: 3, kind: input, shape index: {}]
  %s4 = inlined_call_operand.<no memory space> [shape: f32[1,1], index: 4, kind: input, shape index: {}]
  %s5 = inlined_call_operand.vmem [shape: f32[32,32], index: 5, kind: output, shape index: {0}]
  %s6 = inlined_call_operand.vmem [shape: f32[1,32], index: 6, kind: output, shape index: {1}]
  %s7 = inlined_call_operand.vmem [shape: f32[1,32], index: 7, kind: output, shape index: {2}]
  %8 = xla_tuple %s5, %s6, %s7
  %s9 = sld [smem:[#allocation0]]
  $region46: #{unet_multiscale_forward.7} parent=0
    _
  %s11 = ssub.s32 1, %s9
  %s12 = scalar_select 0, %s11, %s9
  %v13 = vstv %s4
  %14 = vst [vmem:[#allocation2] sm:$0x1] %v13
  // Predicated region
  $region2: #{unet_multiscale_forward.7} parent=0 // pred_check
    _
  $region3: #{unet_multiscale_forward.7} parent=0 // pred_check_branch
    %16 = sbr.rel (0) target = $region5
  $region4: #{unet_multiscale_forward.7} parent=0 // pred_region
    _
  $region5: #{unet_multiscale_forward.7} parent=0 // pred_fallthru
    _
  // Predicated region
  $region6: #{unet_multiscale_forward.7} parent=0 // pred_check
    _
  $region7: #{unet_multiscale_forward.7} parent=0 // pred_check_branch
    %18 = sbr.rel (0) target = $region9
  $region8: #{unet_multiscale_forward.7} parent=0 // pred_region
    _
  $region9: #{unet_multiscale_forward.7} parent=0 // pred_fallthru
    _
  // Predicated region
  $region10: #{unet_multiscale_forward.7} parent=0 // pred_check
    _
  $region11: #{unet_multiscale_forward.7} parent=0 // pred_check_branch
    %20 = sbr.rel (0) target = $region13
  $region12: #{unet_multiscale_forward.7} parent=0 // pred_region
    _
  $region13: #{unet_multiscale_forward.7} parent=0 // pred_fallthru
    _
  // Predicated region
  $region14: #{unet_multiscale_forward.7} parent=0 // pred_check
    _
  $region15: #{unet_multiscale_forward.7} parent=0 // pred_check_branch
    %22 = sbr.rel (0) target = $region17
  $region16: #{unet_multiscale_forward.7} parent=0 // pred_region
    _
  $region17: #{unet_multiscale_forward.7} parent=0 // pred_fallthru
    _
  // Predicated region
  $region18: #{unet_multiscale_forward.7} parent=0 // pred_check
    _
  $region19: #{unet_multiscale_forward.7} parent=0 // pred_check_branch
    %24 = sbr.rel (0) target = $region21
  $region20: #{unet_multiscale_forward.7} parent=0 // pred_region
    _
  $region21: #{unet_multiscale_forward.7} parent=0 // pred_fallthru
    _
  %v25 = vld [vmem:[%s1] sm:$0xff]
  %v26 = vld [vmem:[%s1 + $0x8] sm:$0xff]
  %v27 = vld [vmem:[%s1 + $0x10] sm:$0xff]
  %v28 = vld [vmem:[%s1 + $0x18] sm:$0xff]
  %v29 = vld [vmem:[%s1 + $0x20] sm:$0xff]
  %v30 = vld [vmem:[%s1 + $0x28] sm:$0xff]
  %v31 = vld [vmem:[%s1 + $0x30] sm:$0xff]
  %v32 = vld [vmem:[%s1 + $0x38] sm:$0xff]
  %v33 = vld [vmem:[%s0] sm:$0xff]
  %v34 = vld [vmem:[%s0 + $0x8] sm:$0xff]
  %v35 = vld [vmem:[%s0 + $0x10] sm:$0xff]
  %v36 = vld [vmem:[%s0 + $0x18] sm:$0xff]
  %v37 = vld [vmem:[%s0 + $0x20] sm:$0xff]
  %v38 = vld [vmem:[%s0 + $0x28] sm:$0xff]
  %v39 = vld [vmem:[%s0 + $0x30] sm:$0xff]
  %v40 = vld [vmem:[%s0 + $0x38] sm:$0xff]
  %v41 = vld [vmem:[%s0 + $0x40] sm:$0xff]
  %v42 = vld [vmem:[%s0 + $0x48] sm:$0xff]
  %v43 = vld [vmem:[%s0 + $0x50] sm:$0xff]
  %v44 = vld [vmem:[%s0 + $0x58] sm:$0xff]
  %v45 = vld [vmem:[%s0 + $0x60] sm:$0xff]
  %v46 = vld [vmem:[%s0 + $0x68] sm:$0xff]
  %v47 = vld [vmem:[%s0 + $0x70] sm:$0xff]
  %v48 = vld [vmem:[%s0 + $0x78] sm:$0xff]
  %v49 = vld [vmem:[%s0 + $0x80] sm:$0xff]
  %v50 = vld [vmem:[%s0 + $0x88] sm:$0xff]
  %v51 = vld [vmem:[%s2] sm:$0xff]
  %v52 = vld [vmem:[%s2 + $0x8] sm:$0xff]
  %v53 = vld [vmem:[%s2 + $0x10] sm:$0xff]
  %v54 = vld [vmem:[%s2 + $0x18] sm:$0xff]
  %56 = vset.pattern.permute.xlu0 0
  %57 = vperm.xlu0 %56, %v51
  %v58 = vpop.permute.xlu0 %57
  %61 = vset.pattern.permute.xlu0 0
  %62 = vperm.xlu0 %61, %v52
  %v63 = vpop.permute.xlu0 %62
  %66 = vset.pattern.permute.xlu0 0
  %67 = vperm.xlu0 %66, %v53
  %v68 = vpop.permute.xlu0 %67
  %71 = vset.pattern.permute.xlu0 0
  %72 = vperm.xlu0 %71, %v54
  %v73 = vpop.permute.xlu0 %72
  %vm75 = vcmask 130048
  %v77 = vsel %vm75, %v26, 0
  %v80 = vsel %vm75, %v28, 0
  %v83 = vsel %vm75, %v30, 0
  %v86 = vsel %vm75, %v32, 0
  %88 = vmatprep.subr.mxu0 0.0
  %89 = vmatpush1.msra.mxu0 %v33
  %90 = vmatprep.subr.mxu0 0.0
  %91 = vmatpush1.msra.mxu0 %v34
  %92 = vmatprep.subr.mxu0 0.0
  %93 = vmatpush1.msra.mxu0 %v35
  %94 = vmatprep.subr.mxu0 0.0
  %95 = vmatpush1.msra.mxu0 %v36
  %96 = vmatprep.subr.mxu0 0.0
  %97 = vmatpush1.msra.mxu0 %v37
  %98 = vmatprep.subr.mxu0 0.0
  %99 = vmatpush1.msra.mxu0 %v38
  %100 = vmatprep.subr.mxu0 0.0
  %101 = vmatpush1.msra.mxu0 %v39
  %102 = vmatprep.subr.mxu0 0.0
  %103 = vmatpush1.msra.mxu0 %v40
  %104 = vmatprep.subr.mxu0 0.0
  %105 = vmatpush1.msra.mxu0 %v41
  %106 = vmatprep.subr.mxu0 0.0
  %107 = vmatpush1.msra.mxu0 %v42
  %108 = vmatprep.subr.mxu0 0.0
  %109 = vmatpush1.msra.mxu0 %v43
  %110 = vmatprep.subr.mxu0 0.0
  %111 = vmatpush1.msra.mxu0 %v44
  %112 = vmatprep.subr.mxu0 0.0
  %113 = vmatpush1.msra.mxu0 %v45
  %114 = vmatprep.subr.mxu0 0.0
  %115 = vmatpush1.msra.mxu0 %v46
  %116 = vmatprep.subr.mxu0 0.0
  %117 = vmatpush1.msra.mxu0 %v47
  %118 = vmatprep.subr.mxu0 0.0
  %119 = vmatpush1.msra.mxu0 %v48
  %120 = vmatprep.subr.mxu0 0.0
  %121 = vmatpush1.msra.mxu0 %v49
  %122 = vmatprep.subr.mxu0 0.0
  %123 = vmatpush1.msra.mxu0 %v50
  %124 = vmatprep.subr.mxu0 0.0
  %125 = vmatpush1.msra.mxu0 0.0
  %126 = vmatprep.subr.mxu0 0.0
  %127 = vmatpush1.msra.mxu0 0.0
  %128 = vmatprep.subr.mxu0 0.0
  %129 = vmatpush1.msra.mxu0 0.0
  %130 = vmatprep.subr.mxu0 0.0
  %131 = vmatpush1.msra.mxu0 0.0
  %132 = vmatprep.subr.mxu0 0.0
  %133 = vmatpush1.msra.mxu0 0.0
  %134 = vmatprep.subr.mxu0 0.0
  %135 = vmatpush1.msra.mxu0 0.0
  %136 = vmatprep.subr.mxu0 0.0
  %137 = vmatpush1.msra.mxu0 0.0
  %138 = vmatprep.subr.mxu0 0.0
  %139 = vmatpush1.msra.mxu0 0.0
  %140 = vmatprep.subr.mxu0 0.0
  %141 = vmatpush1.msra.mxu0 0.0
  %142 = vmatprep.subr.mxu0 0.0
  %143 = vmatpush1.msra.mxu0 0.0
  %144 = vmatprep.subr.mxu0 0.0
  %145 = vmatpush1.msra.mxu0 0.0
  %146 = vmatprep.subr.mxu0 0.0
  %147 = vmatpush1.msra.mxu0 0.0
  %148 = vmatprep.subr.mxu0 0.0
  %149 = vmatpush1.msra.mxu0 0.0
  %150 = vmatprep.subr.mxu0 0.0
  %151 = vmatpush1.msra.mxu0 0.0
  %152 = vmatprep.mubr.f32.mxu0 %v77
  %153 = vmatmul.mubr.f32.gmra.mrb[0].mxu0 %v25
  %v154 = vpop.f32.mrb[0].mxu0
  %v155 = vadd.f32 %v58, %v154
  %v156 = vpop.f32.mrb[0].mxu0
  %157 = vmatprep.mubr.f32.mxu0 %v80
  %158 = vmatmul.mubr.f32.gmra.mrb[0].mxu0 %v27
  %v159 = vpop.f32.mrb[0].mxu0
  %v160 = vadd.f32 %v63, %v159
  %v161 = vpop.f32.mrb[0].mxu0
  %162 = vmatprep.mubr.f32.mxu0 %v83
  %163 = vmatmul.mubr.f32.gmra.mrb[0].mxu0 %v29
  %v164 = vpop.f32.mrb[0].mxu0
  %v165 = vadd.f32 %v68, %v164
  %v166 = vpop.f32.mrb[0].mxu0
  %167 = vmatprep.mubr.f32.mxu0 %v86
  %168 = vmatmul.mubr.f32.gmra.mrb[0].mxu0 %v31
  %v169 = vpop.f32.mrb[0].mxu0
  %v170 = vadd.f32 %v73, %v169
  %v171 = vpop.f32.mrb[0].mxu0
  %172 = vdwg.mxu0
  %v173 = vmax.f32 %v155, 0.0
  %v174 = vmax.f32 %v160, 0.0
  %v175 = vmax.f32 %v165, 0.0
  %v176 = vmax.f32 %v170, 0.0
  %vm177 = vcmask 261120
  %178 = vst.msk [vmem:[%s5] sm:$0xff] %vm177, %v173
  %179 = vst.msk [vmem:[%s5 + $0x8] sm:$0xff] %vm177, %v174
  %180 = vst.msk [vmem:[%s5 + $0x10] sm:$0xff] %vm177, %v175
  %181 = vst.msk [vmem:[%s5 + $0x18] sm:$0xff] %vm177, %v176
  %v182 = vld [vmem:[%s3] sm:$0x1]
  %v183 = vld [vmem:[#allocation2] sm:$0x1]
  %185 = vset.pattern.permute.xlu0 0
  %186 = vperm.xlu0 %185, %v183
  %v187 = vpop.permute.xlu0 %186
  %v189 = vlaneseq
  %v190 = vshrl.u32 %v189, 7
  %v191 = vsub.s32 0, %v190
  %v192 = vrot.slane %v187, %v191
  %v194 = vsel %vm177, %v182, 0
  %196 = vmatprep.subr.mxu0 0.0
  %197 = vmatpush1.msra.mxu0 %v173
  %198 = vmatprep.subr.mxu0 0.0
  %199 = vmatpush1.msra.mxu0 %v174
  %200 = vmatprep.subr.mxu0 0.0
  %201 = vmatpush1.msra.mxu0 %v175
  %202 = vmatprep.subr.mxu0 0.0
  %203 = vmatpush1.msra.mxu0 %v176
  %204 = vmatprep.subr.mxu0 0.0
  %205 = vmatpush1.msra.mxu0 0.0
  %206 = vmatprep.subr.mxu0 0.0
  %207 = vmatpush1.msra.mxu0 0.0
  %208 = vmatprep.subr.mxu0 0.0
  %209 = vmatpush1.msra.mxu0 0.0
  %210 = vmatprep.subr.mxu0 0.0
  %211 = vmatpush1.msra.mxu0 0.0
  %212 = vmatprep.subr.mxu0 0.0
  %213 = vmatpush1.msra.mxu0 0.0
  %214 = vmatprep.subr.mxu0 0.0
  %215 = vmatpush1.msra.mxu0 0.0
  %216 = vmatprep.subr.mxu0 0.0
  %217 = vmatpush1.msra.mxu0 0.0
  %218 = vmatprep.subr.mxu0 0.0
  %219 = vmatpush1.msra.mxu0 0.0
  %220 = vmatprep.subr.mxu0 0.0
  %221 = vmatpush1.msra.mxu0 0.0
  %222 = vmatprep.subr.mxu0 0.0
  %223 = vmatpush1.msra.mxu0 0.0
  %224 = vmatprep.subr.mxu0 0.0
  %225 = vmatpush1.msra.mxu0 0.0
  %226 = vmatprep.subr.mxu0 0.0
  %227 = vmatpush1.msra.mxu0 0.0
  %228 = vmatprep.subr.mxu0 0.0
  %229 = vmatpush1.msra.mxu0 0.0
  %230 = vmatprep.subr.mxu0 0.0
  %231 = vmatpush1.msra.mxu0 0.0
  %232 = vmatprep.subr.mxu0 0.0
  %233 = vmatpush1.msra.mxu0 0.0
  %234 = vmatprep.subr.mxu0 0.0
  %235 = vmatpush1.msra.mxu0 0.0
  %236 = vmatprep.subr.mxu0 0.0
  %237 = vmatpush1.msra.mxu0 0.0
  %238 = vmatprep.subr.mxu0 0.0
  %239 = vmatpush1.msra.mxu0 0.0
  %240 = vmatprep.subr.mxu0 0.0
  %241 = vmatpush1.msra.mxu0 0.0
  %242 = vmatprep.subr.mxu0 0.0
  %243 = vmatpush1.msra.mxu0 0.0
  %244 = vmatprep.subr.mxu0 0.0
  %245 = vmatpush1.msra.mxu0 0.0
  %246 = vmatprep.subr.mxu0 0.0
  %247 = vmatpush1.msra.mxu0 0.0
  %248 = vmatprep.subr.mxu0 0.0
  %249 = vmatpush1.msra.mxu0 0.0
  %250 = vmatprep.subr.mxu0 0.0
  %251 = vmatpush1.msra.mxu0 0.0
  %252 = vmatprep.subr.mxu0 0.0
  %253 = vmatpush1.msra.mxu0 0.0
  %254 = vmatprep.subr.mxu0 0.0
  %255 = vmatpush1.msra.mxu0 0.0
  %256 = vmatprep.subr.mxu0 0.0
  %257 = vmatpush1.msra.mxu0 0.0
  %258 = vmatprep.subr.mxu0 0.0
  %259 = vmatpush1.msra.mxu0 0.0
  %260 = vmatprep.mubr.f32.mxu0 0.0
  %261 = vmatmul.mubr.f32.gmra.mrb[0].mxu0 %v194
  %v262 = vpop.f32.mrb[0].mxu0
  %v263 = vadd.f32 %v192, %v262
  %v264 = vpop.f32.mrb[0].mxu0
  %265 = vdwg.mxu0
  %vm266 = vcmask 253952
  %267 = vst.msk [vmem:[%s6] sm:$0x1] %vm266, %v263
  %v268 = vxor.u32 %v263, 2147483648
  %v269 = vmul.f32 %v268, 1.442695
  %v270 = vpow.pop %v269
  %v271 = vadd.f32 %v270, 1.0
  %v272 = vrcp.pop %v271
  %v273 = vmul.f32 1.0, %v272
  %274 = vst.msk [vmem:[%s7] sm:$0x1] %vm266, %v273
  // Predicated region
  $region22: #{unet_multiscale_forward.7} parent=0 // pred_check
    _
  $region23: #{unet_multiscale_forward.7} parent=0 // pred_check_branch
    %276 = sbr.rel (0) target = $region25
  $region24: #{unet_multiscale_forward.7} parent=0 // pred_region
    _
  $region25: #{unet_multiscale_forward.7} parent=0 // pred_fallthru
    _
  // Predicated region
  $region26: #{unet_multiscale_forward.7} parent=0 // pred_check
    _
  $region27: #{unet_multiscale_forward.7} parent=0 // pred_check_branch
    %278 = sbr.rel (0) target = $region29
  $region28: #{unet_multiscale_forward.7} parent=0 // pred_region
    _
  $region29: #{unet_multiscale_forward.7} parent=0 // pred_fallthru
    _
  // Predicated region
  $region30: #{unet_multiscale_forward.7} parent=0 // pred_check
    _
  $region31: #{unet_multiscale_forward.7} parent=0 // pred_check_branch
    %280 = sbr.rel (0) target = $region33
  $region32: #{unet_multiscale_forward.7} parent=0 // pred_region
    _
  $region33: #{unet_multiscale_forward.7} parent=0 // pred_fallthru
    _
  // Predicated region
  $region34: #{unet_multiscale_forward.7} parent=0 // pred_check
    _
  $region35: #{unet_multiscale_forward.7} parent=0 // pred_check_branch
    %282 = sbr.rel (0) target = $region37
  $region36: #{unet_multiscale_forward.7} parent=0 // pred_region
    _
  $region37: #{unet_multiscale_forward.7} parent=0 // pred_fallthru
    _
  // Predicated region
  $region38: #{unet_multiscale_forward.7} parent=0 // pred_check
    _
  $region39: #{unet_multiscale_forward.7} parent=0 // pred_check_branch
    %284 = sbr.rel (0) target = $region41
  $region40: #{unet_multiscale_forward.7} parent=0 // pred_region
    _
  $region41: #{unet_multiscale_forward.7} parent=0 // pred_fallthru
    _
  // Predicated region
  $region42: #{unet_multiscale_forward.7} parent=0 // pred_check
    _
  $region43: #{unet_multiscale_forward.7} parent=0 // pred_check_branch
    %286 = sbr.rel (0) target = $region45
  $region44: #{unet_multiscale_forward.7} parent=0 // pred_region
    _
  $region45: #{unet_multiscale_forward.7} parent=0 // pred_fallthru
    _

// kernel: unet_multiscale_forward.8
$region0: #{unet_multiscale_forward.8}
  #allocation0 [shape = 'u32[]', space=smem, size = 0x4, offset = 0x4, fixed_abs, tag = 'smem constant byte address 0x4 - core index']
  #allocation1 [shape = 'u32[144,128]{1,0:T(1,128)}', space=vmem, size = 0x12000, scoped, tag = 'internal scratch']
  #allocation2 [shape = 'f32[1,1]{1,0:T(1,128)S(1)}', space=vmem, size = 0x200, scoped, tag = 'scoped memory for unet_multiscale_forward.8']
  %s0 = inlined_call_operand.vmem [shape: f32[441,128], index: 0, kind: input, shape index: {}]
  %s1 = inlined_call_operand.vmem [shape: f32[16,441], index: 1, kind: input, shape index: {}]
  %s2 = inlined_call_operand.vmem [shape: f32[16,1], index: 2, kind: input, shape index: {}]
  %s3 = inlined_call_operand.vmem [shape: f32[1,16], index: 3, kind: input, shape index: {}]
  %s4 = inlined_call_operand.<no memory space> [shape: f32[1,1], index: 4, kind: input, shape index: {}]
  %s5 = inlined_call_operand.vmem [shape: f32[16,128], index: 5, kind: output, shape index: {0}]
  %s6 = inlined_call_operand.vmem [shape: f32[1,128], index: 6, kind: output, shape index: {1}]
  %s7 = inlined_call_operand.vmem [shape: f32[1,128], index: 7, kind: output, shape index: {2}]
  %8 = xla_tuple %s5, %s6, %s7
  %s9 = sld [smem:[#allocation0]]
  $region46: #{unet_multiscale_forward.8} parent=0
    _
  %s11 = ssub.s32 1, %s9
  %s12 = scalar_select 0, %s11, %s9
  %v13 = vstv %s4
  %14 = vst [vmem:[#allocation2] sm:$0x1] %v13
  // Predicated region
  $region2: #{unet_multiscale_forward.8} parent=0 // pred_check
    _
  $region3: #{unet_multiscale_forward.8} parent=0 // pred_check_branch
    %16 = sbr.rel (0) target = $region5
  $region4: #{unet_multiscale_forward.8} parent=0 // pred_region
    _
  $region5: #{unet_multiscale_forward.8} parent=0 // pred_fallthru
    _
  // Predicated region
  $region6: #{unet_multiscale_forward.8} parent=0 // pred_check
    _
  $region7: #{unet_multiscale_forward.8} parent=0 // pred_check_branch
    %18 = sbr.rel (0) target = $region9
  $region8: #{unet_multiscale_forward.8} parent=0 // pred_region
    _
  $region9: #{unet_multiscale_forward.8} parent=0 // pred_fallthru
    _
  // Predicated region
  $region10: #{unet_multiscale_forward.8} parent=0 // pred_check
    _
  $region11: #{unet_multiscale_forward.8} parent=0 // pred_check_branch
    %20 = sbr.rel (0) target = $region13
  $region12: #{unet_multiscale_forward.8} parent=0 // pred_region
    _
  $region13: #{unet_multiscale_forward.8} parent=0 // pred_fallthru
    _
  // Predicated region
  $region14: #{unet_multiscale_forward.8} parent=0 // pred_check
    _
  $region15: #{unet_multiscale_forward.8} parent=0 // pred_check_branch
    %22 = sbr.rel (0) target = $region17
  $region16: #{unet_multiscale_forward.8} parent=0 // pred_region
    _
  $region17: #{unet_multiscale_forward.8} parent=0 // pred_fallthru
    _
  // Predicated region
  $region18: #{unet_multiscale_forward.8} parent=0 // pred_check
    _
  $region19: #{unet_multiscale_forward.8} parent=0 // pred_check_branch
    %24 = sbr.rel (0) target = $region21
  $region20: #{unet_multiscale_forward.8} parent=0 // pred_region
    _
  $region21: #{unet_multiscale_forward.8} parent=0 // pred_fallthru
    _
  %v25 = vld [vmem:[%s1] sm:$0xff]
  %v26 = vld [vmem:[%s1 + $0x8] sm:$0xff]
  %v27 = vld [vmem:[%s1 + $0x10] sm:$0xff]
  %v28 = vld [vmem:[%s1 + $0x18] sm:$0xff]
  %v29 = vld [vmem:[%s1 + $0x20] sm:$0xff]
  %v30 = vld [vmem:[%s1 + $0x28] sm:$0xff]
  %v31 = vld [vmem:[%s1 + $0x30] sm:$0xff]
  %v32 = vld [vmem:[%s1 + $0x38] sm:$0xff]
  %v33 = vld [vmem:[%s0] sm:$0xff]
  %v34 = vld [vmem:[%s0 + $0x8] sm:$0xff]
  %v35 = vld [vmem:[%s0 + $0x10] sm:$0xff]
  %v36 = vld [vmem:[%s0 + $0x18] sm:$0xff]
  %v37 = vld [vmem:[%s0 + $0x20] sm:$0xff]
  %v38 = vld [vmem:[%s0 + $0x28] sm:$0xff]
  %v39 = vld [vmem:[%s0 + $0x30] sm:$0xff]
  %v40 = vld [vmem:[%s0 + $0x38] sm:$0xff]
  %v41 = vld [vmem:[%s0 + $0x40] sm:$0xff]
  %v42 = vld [vmem:[%s0 + $0x48] sm:$0xff]
  %v43 = vld [vmem:[%s0 + $0x50] sm:$0xff]
  %v44 = vld [vmem:[%s0 + $0x58] sm:$0xff]
  %v45 = vld [vmem:[%s0 + $0x60] sm:$0xff]
  %v46 = vld [vmem:[%s0 + $0x68] sm:$0xff]
  %v47 = vld [vmem:[%s0 + $0x70] sm:$0xff]
  %v48 = vld [vmem:[%s0 + $0x78] sm:$0xff]
  %v49 = vld [vmem:[%s0 + $0x80] sm:$0xff]
  %v50 = vld [vmem:[%s0 + $0x88] sm:$0xff]
  %v51 = vld [vmem:[%s0 + $0x90] sm:$0xff]
  %v52 = vld [vmem:[%s0 + $0x98] sm:$0xff]
  %v53 = vld [vmem:[%s0 + $0xa0] sm:$0xff]
  %v54 = vld [vmem:[%s0 + $0xa8] sm:$0xff]
  %v55 = vld [vmem:[%s0 + $0xb0] sm:$0xff]
  %v56 = vld [vmem:[%s0 + $0xb8] sm:$0xff]
  %v57 = vld [vmem:[%s0 + $0xc0] sm:$0xff]
  %v58 = vld [vmem:[%s0 + $0xc8] sm:$0xff]
  %v59 = vld [vmem:[%s0 + $0xd0] sm:$0xff]
  %v60 = vld [vmem:[%s0 + $0xd8] sm:$0xff]
  %v61 = vld [vmem:[%s0 + $0xe0] sm:$0xff]
  %v62 = vld [vmem:[%s0 + $0xe8] sm:$0xff]
  %v63 = vld [vmem:[%s0 + $0xf0] sm:$0xff]
  %v64 = vld [vmem:[%s0 + $0xf8] sm:$0xff]
  %v65 = vld [vmem:[%s0 + $0x100] sm:$0xff]
  %v66 = vld [vmem:[%s0 + $0x108] sm:$0xff]
  %v67 = vld [vmem:[%s0 + $0x110] sm:$0xff]
  %v68 = vld [vmem:[%s0 + $0x118] sm:$0xff]
  %v69 = vld [vmem:[%s0 + $0x120] sm:$0xff]
  %v70 = vld [vmem:[%s0 + $0x128] sm:$0xff]
  %v71 = vld [vmem:[%s0 + $0x130] sm:$0xff]
  %v72 = vld [vmem:[%s0 + $0x138] sm:$0xff]
  %v73 = vld [vmem:[%s0 + $0x140] sm:$0xff]
  %v74 = vld [vmem:[%s0 + $0x148] sm:$0xff]
  %v75 = vld [vmem:[%s0 + $0x150] sm:$0xff]
  %v76 = vld [vmem:[%s0 + $0x158] sm:$0xff]
  %v77 = vld [vmem:[%s0 + $0x160] sm:$0xff]
  %v78 = vld [vmem:[%s0 + $0x168] sm:$0xff]
  %v79 = vld [vmem:[%s0 + $0x170] sm:$0xff]
  %v80 = vld [vmem:[%s0 + $0x178] sm:$0xff]
  %v81 = vld [vmem:[%s0 + $0x180] sm:$0xff]
  %v82 = vld [vmem:[%s0 + $0x188] sm:$0xff]
  %v83 = vld [vmem:[%s0 + $0x190] sm:$0xff]
  %v84 = vld [vmem:[%s0 + $0x198] sm:$0xff]
  %v85 = vld [vmem:[%s0 + $0x1a0] sm:$0xff]
  %v86 = vld [vmem:[%s0 + $0x1a8] sm:$0xff]
  %v87 = vld [vmem:[%s0 + $0x1b0] sm:$0xff]
  %v88 = vld [vmem:[%s0 + $0x1b8] sm:$0x1]
  %v89 = vld [vmem:[%s2] sm:$0xff]
  %v90 = vld [vmem:[%s2 + $0x8] sm:$0xff]
  %92 = vset.pattern.permute.xlu0 0
  %93 = vperm.xlu0 %92, %v89
  %v94 = vpop.permute.xlu0 %93
  %97 = vset.pattern.permute.xlu0 0
  %98 = vperm.xlu0 %97, %v90
  %v99 = vpop.permute.xlu0 %98
  %vm101 = vcmask 465920
  %v103 = vsel %vm101, %v28, 0
  %v106 = vsel %vm101, %v32, 0
  %vm108 = vcmask 1040384
  %v110 = vsel %vm108, %v88, 0
  %112 = vmatprep.subr.mxu0 0.0
  %113 = vmatpush1.msra.mxu0 %v33
  %114 = vmatprep.subr.mxu0 0.0
  %115 = vmatpush1.msra.mxu0 %v34
  %116 = vmatprep.subr.mxu0 0.0
  %117 = vmatpush1.msra.mxu0 %v35
  %118 = vmatprep.subr.mxu0 0.0
  %119 = vmatpush1.msra.mxu0 %v36
  %120 = vmatprep.subr.mxu0 0.0
  %121 = vmatpush1.msra.mxu0 %v37
  %122 = vmatprep.subr.mxu0 0.0
  %123 = vmatpush1.msra.mxu0 %v38
  %124 = vmatprep.subr.mxu0 0.0
  %125 = vmatpush1.msra.mxu0 %v39
  %126 = vmatprep.subr.mxu0 0.0
  %127 = vmatpush1.msra.mxu0 %v40
  %128 = vmatprep.subr.mxu0 0.0
  %129 = vmatpush1.msra.mxu0 %v41
  %130 = vmatprep.subr.mxu0 0.0
  %131 = vmatpush1.msra.mxu0 %v42
  %132 = vmatprep.subr.mxu0 0.0
  %133 = vmatpush1.msra.mxu0 %v43
  %134 = vmatprep.subr.mxu0 0.0
  %135 = vmatpush1.msra.mxu0 %v44
  %136 = vmatprep.subr.mxu0 0.0
  %137 = vmatpush1.msra.mxu0 %v45
  %138 = vmatprep.subr.mxu0 0.0
  %139 = vmatpush1.msra.mxu0 %v46
  %140 = vmatprep.subr.mxu0 0.0
  %141 = vmatpush1.msra.mxu0 %v47
  %142 = vmatprep.subr.mxu0 0.0
  %143 = vmatpush1.msra.mxu0 %v48
  %144 = vmatprep.subr.mxu0 0.0
  %145 = vmatpush1.msra.mxu0 %v49
  %146 = vmatprep.subr.mxu0 0.0
  %147 = vmatpush1.msra.mxu0 %v50
  %148 = vmatprep.subr.mxu0 0.0
  %149 = vmatpush1.msra.mxu0 %v51
  %150 = vmatprep.subr.mxu0 0.0
  %151 = vmatpush1.msra.mxu0 %v52
  %152 = vmatprep.subr.mxu0 0.0
  %153 = vmatpush1.msra.mxu0 %v53
  %154 = vmatprep.subr.mxu0 0.0
  %155 = vmatpush1.msra.mxu0 %v54
  %156 = vmatprep.subr.mxu0 0.0
  %157 = vmatpush1.msra.mxu0 %v55
  %158 = vmatprep.subr.mxu0 0.0
  %159 = vmatpush1.msra.mxu0 %v56
  %160 = vmatprep.subr.mxu0 0.0
  %161 = vmatpush1.msra.mxu0 %v57
  %162 = vmatprep.subr.mxu0 0.0
  %163 = vmatpush1.msra.mxu0 %v58
  %164 = vmatprep.subr.mxu0 0.0
  %165 = vmatpush1.msra.mxu0 %v59
  %166 = vmatprep.subr.mxu0 0.0
  %167 = vmatpush1.msra.mxu0 %v60
  %168 = vmatprep.subr.mxu0 0.0
  %169 = vmatpush1.msra.mxu0 %v61
  %170 = vmatprep.subr.mxu0 0.0
  %171 = vmatpush1.msra.mxu0 %v62
  %172 = vmatprep.subr.mxu0 0.0
  %173 = vmatpush1.msra.mxu0 %v63
  %174 = vmatprep.subr.mxu0 0.0
  %175 = vmatpush1.msra.mxu0 %v64
  %176 = vmatprep.mubr.f32.mxu0 %v26
  %177 = vmatmul.mubr.f32.gmra.mrb[0].mxu0 %v25
  %v178 = vpop.f32.mrb[0].mxu0
  %v179 = vadd.f32 %v94, %v178
  %v180 = vpop.f32.mrb[0].mxu0
  %181 = vmatprep.mubr.f32.mxu0 %v30
  %182 = vmatmul.mubr.f32.gmra.mrb[0].mxu0 %v29
  %v183 = vpop.f32.mrb[0].mxu0
  %v184 = vadd.f32 %v99, %v183
  %v185 = vpop.f32.mrb[0].mxu0
  %186 = vdwg.mxu0
  %187 = vmatprep.subr.mxu0 0.0
  %188 = vmatpush1.msra.mxu0 %v65
  %189 = vmatprep.subr.mxu0 0.0
  %190 = vmatpush1.msra.mxu0 %v66
  %191 = vmatprep.subr.mxu0 0.0
  %192 = vmatpush1.msra.mxu0 %v67
  %193 = vmatprep.subr.mxu0 0.0
  %194 = vmatpush1.msra.mxu0 %v68
  %195 = vmatprep.subr.mxu0 0.0
  %196 = vmatpush1.msra.mxu0 %v69
  %197 = vmatprep.subr.mxu0 0.0
  %198 = vmatpush1.msra.mxu0 %v70
  %199 = vmatprep.subr.mxu0 0.0
  %200 = vmatpush1.msra.mxu0 %v71
  %201 = vmatprep.subr.mxu0 0.0
  %202 = vmatpush1.msra.mxu0 %v72
  %203 = vmatprep.subr.mxu0 0.0
  %204 = vmatpush1.msra.mxu0 %v73
  %205 = vmatprep.subr.mxu0 0.0
  %206 = vmatpush1.msra.mxu0 %v74
  %207 = vmatprep.subr.mxu0 0.0
  %208 = vmatpush1.msra.mxu0 %v75
  %209 = vmatprep.subr.mxu0 0.0
  %210 = vmatpush1.msra.mxu0 %v76
  %211 = vmatprep.subr.mxu0 0.0
  %212 = vmatpush1.msra.mxu0 %v77
  %213 = vmatprep.subr.mxu0 0.0
  %214 = vmatpush1.msra.mxu0 %v78
  %215 = vmatprep.subr.mxu0 0.0
  %216 = vmatpush1.msra.mxu0 %v79
  %217 = vmatprep.subr.mxu0 0.0
  %218 = vmatpush1.msra.mxu0 %v80
  %219 = vmatprep.subr.mxu0 0.0
  %220 = vmatpush1.msra.mxu0 %v81
  %221 = vmatprep.subr.mxu0 0.0
  %222 = vmatpush1.msra.mxu0 %v82
  %223 = vmatprep.subr.mxu0 0.0
  %224 = vmatpush1.msra.mxu0 %v83
  %225 = vmatprep.subr.mxu0 0.0
  %226 = vmatpush1.msra.mxu0 %v84
  %227 = vmatprep.subr.mxu0 0.0
  %228 = vmatpush1.msra.mxu0 %v85
  %229 = vmatprep.subr.mxu0 0.0
  %230 = vmatpush1.msra.mxu0 %v86
  %231 = vmatprep.subr.mxu0 0.0
  %232 = vmatpush1.msra.mxu0 %v87
  %233 = vmatprep.subr.mxu0 0.0
  %234 = vmatpush1.msra.mxu0 %v110
  %235 = vmatprep.subr.mxu0 0.0
  %236 = vmatpush1.msra.mxu0 0.0
  %237 = vmatprep.subr.mxu0 0.0
  %238 = vmatpush1.msra.mxu0 0.0
  %239 = vmatprep.subr.mxu0 0.0
  %240 = vmatpush1.msra.mxu0 0.0
  %241 = vmatprep.subr.mxu0 0.0
  %242 = vmatpush1.msra.mxu0 0.0
  %243 = vmatprep.subr.mxu0 0.0
  %244 = vmatpush1.msra.mxu0 0.0
  %245 = vmatprep.subr.mxu0 0.0
  %246 = vmatpush1.msra.mxu0 0.0
  %247 = vmatprep.subr.mxu0 0.0
  %248 = vmatpush1.msra.mxu0 0.0
  %249 = vmatprep.subr.mxu0 0.0
  %250 = vmatpush1.msra.mxu0 0.0
  %251 = vmatprep.mubr.f32.mxu0 %v103
  %252 = vmatmul.mubr.f32.gmra.mrb[0].mxu0 %v27
  %v253 = vpop.f32.mrb[0].mxu0
  %v254 = vadd.f32 %v179, %v253
  %v255 = vpop.f32.mrb[0].mxu0
  %256 = vmatprep.mubr.f32.mxu0 %v106
  %257 = vmatmul.mubr.f32.gmra.mrb[0].mxu0 %v31
  %v258 = vpop.f32.mrb[0].mxu0
  %v259 = vadd.f32 %v184, %v258
  %v260 = vpop.f32.mrb[0].mxu0
  %261 = vdwg.mxu0
  %v262 = vmax.f32 %v254, 0.0
  %v263 = vmax.f32 %v259, 0.0
  %264 = vst [vmem:[%s5] sm:$0xff] %v262
  %265 = vst [vmem:[%s5 + $0x8] sm:$0xff] %v263
  %v266 = vld [vmem:[%s3] sm:$0x1]
  %v267 = vld [vmem:[#allocation2] sm:$0x1]
  %269 = vset.pattern.permute.xlu0 0
  %270 = vperm.xlu0 %269, %v267
  %v271 = vpop.permute.xlu0 %270
  %v273 = vlaneseq
  %v274 = vshrl.u32 %v273, 7
  %v275 = vsub.s32 0, %v274
  %v276 = vrot.slane %v271, %v275
  %vm277 = vcmask 130048
  %v279 = vsel %vm277, %v266, 0
  %281 = vmatprep.subr.mxu0 0.0
  %282 = vmatpush1.msra.mxu0 %v262
  %283 = vmatprep.subr.mxu0 0.0
  %284 = vmatpush1.msra.mxu0 %v263
  %285 = vmatprep.subr.mxu0 0.0
  %286 = vmatpush1.msra.mxu0 0.0
  %287 = vmatprep.subr.mxu0 0.0
  %288 = vmatpush1.msra.mxu0 0.0
  %289 = vmatprep.subr.mxu0 0.0
  %290 = vmatpush1.msra.mxu0 0.0
  %291 = vmatprep.subr.mxu0 0.0
  %292 = vmatpush1.msra.mxu0 0.0
  %293 = vmatprep.subr.mxu0 0.0
  %294 = vmatpush1.msra.mxu0 0.0
  %295 = vmatprep.subr.mxu0 0.0
  %296 = vmatpush1.msra.mxu0 0.0
  %297 = vmatprep.subr.mxu0 0.0
  %298 = vmatpush1.msra.mxu0 0.0
  %299 = vmatprep.subr.mxu0 0.0
  %300 = vmatpush1.msra.mxu0 0.0
  %301 = vmatprep.subr.mxu0 0.0
  %302 = vmatpush1.msra.mxu0 0.0
  %303 = vmatprep.subr.mxu0 0.0
  %304 = vmatpush1.msra.mxu0 0.0
  %305 = vmatprep.subr.mxu0 0.0
  %306 = vmatpush1.msra.mxu0 0.0
  %307 = vmatprep.subr.mxu0 0.0
  %308 = vmatpush1.msra.mxu0 0.0
  %309 = vmatprep.subr.mxu0 0.0
  %310 = vmatpush1.msra.mxu0 0.0
  %311 = vmatprep.subr.mxu0 0.0
  %312 = vmatpush1.msra.mxu0 0.0
  %313 = vmatprep.subr.mxu0 0.0
  %314 = vmatpush1.msra.mxu0 0.0
  %315 = vmatprep.subr.mxu0 0.0
  %316 = vmatpush1.msra.mxu0 0.0
  %317 = vmatprep.subr.mxu0 0.0
  %318 = vmatpush1.msra.mxu0 0.0
  %319 = vmatprep.subr.mxu0 0.0
  %320 = vmatpush1.msra.mxu0 0.0
  %321 = vmatprep.subr.mxu0 0.0
  %322 = vmatpush1.msra.mxu0 0.0
  %323 = vmatprep.subr.mxu0 0.0
  %324 = vmatpush1.msra.mxu0 0.0
  %325 = vmatprep.subr.mxu0 0.0
  %326 = vmatpush1.msra.mxu0 0.0
  %327 = vmatprep.subr.mxu0 0.0
  %328 = vmatpush1.msra.mxu0 0.0
  %329 = vmatprep.subr.mxu0 0.0
  %330 = vmatpush1.msra.mxu0 0.0
  %331 = vmatprep.subr.mxu0 0.0
  %332 = vmatpush1.msra.mxu0 0.0
  %333 = vmatprep.subr.mxu0 0.0
  %334 = vmatpush1.msra.mxu0 0.0
  %335 = vmatprep.subr.mxu0 0.0
  %336 = vmatpush1.msra.mxu0 0.0
  %337 = vmatprep.subr.mxu0 0.0
  %338 = vmatpush1.msra.mxu0 0.0
  %339 = vmatprep.subr.mxu0 0.0
  %340 = vmatpush1.msra.mxu0 0.0
  %341 = vmatprep.subr.mxu0 0.0
  %342 = vmatpush1.msra.mxu0 0.0
  %343 = vmatprep.subr.mxu0 0.0
  %344 = vmatpush1.msra.mxu0 0.0
  %345 = vmatprep.mubr.f32.mxu0 0.0
  %346 = vmatmul.mubr.f32.gmra.mrb[0].mxu0 %v279
  %v347 = vpop.f32.mrb[0].mxu0
  %v348 = vadd.f32 %v276, %v347
  %v349 = vpop.f32.mrb[0].mxu0
  %350 = vdwg.mxu0
  %351 = vst [vmem:[%s6] sm:$0x1] %v348
  %v352 = vxor.u32 %v348, 2147483648
  %v353 = vmul.f32 %v352, 1.442695
  %v354 = vpow.pop %v353
  %v355 = vadd.f32 %v354, 1.0
  %v356 = vrcp.pop %v355
  %v357 = vmul.f32 1.0, %v356
  %358 = vst [vmem:[%s7] sm:$0x1] %v357
  // Predicated region
  $region22: #{unet_multiscale_forward.8} parent=0 // pred_check
    _
  $region23: #{unet_multiscale_forward.8} parent=0 // pred_check_branch
    %360 = sbr.rel (0) target = $region25
  $region24: #{unet_multiscale_forward.8} parent=0 // pred_region
    _
  $region25: #{unet_multiscale_forward.8} parent=0 // pred_fallthru
    _
  // Predicated region
  $region26: #{unet_multiscale_forward.8} parent=0 // pred_check
    _
  $region27: #{unet_multiscale_forward.8} parent=0 // pred_check_branch
    %362 = sbr.rel (0) target = $region29
  $region28: #{unet_multiscale_forward.8} parent=0 // pred_region
    _
  $region29: #{unet_multiscale_forward.8} parent=0 // pred_fallthru
    _
  // Predicated region
  $region30: #{unet_multiscale_forward.8} parent=0 // pred_check
    _
  $region31: #{unet_multiscale_forward.8} parent=0 // pred_check_branch
    %364 = sbr.rel (0) target = $region33
  $region32: #{unet_multiscale_forward.8} parent=0 // pred_region
    _
  $region33: #{unet_multiscale_forward.8} parent=0 // pred_fallthru
    _
  // Predicated region
  $region34: #{unet_multiscale_forward.8} parent=0 // pred_check
    _
  $region35: #{unet_multiscale_forward.8} parent=0 // pred_check_branch
    %366 = sbr.rel (0) target = $region37
  $region36: #{unet_multiscale_forward.8} parent=0 // pred_region
    _
  $region37: #{unet_multiscale_forward.8} parent=0 // pred_fallthru
    _
  // Predicated region
  $region38: #{unet_multiscale_forward.8} parent=0 // pred_check
    _
  $region39: #{unet_multiscale_forward.8} parent=0 // pred_check_branch
    %368 = sbr.rel (0) target = $region41
  $region40: #{unet_multiscale_forward.8} parent=0 // pred_region
    _
  $region41: #{unet_multiscale_forward.8} parent=0 // pred_fallthru
    _
  // Predicated region
  $region42: #{unet_multiscale_forward.8} parent=0 // pred_check
    _
  $region43: #{unet_multiscale_forward.8} parent=0 // pred_check_branch
    %370 = sbr.rel (0) target = $region45
  $region44: #{unet_multiscale_forward.8} parent=0 // pred_region
    _
  $region45: #{unet_multiscale_forward.8} parent=0 // pred_fallthru
    _

// kernel: unet_multiscale_forward.9
$region0: #{unet_multiscale_forward.9}
  #allocation0 [shape = 'u32[]', space=smem, size = 0x4, offset = 0x4, fixed_abs, tag = 'smem constant byte address 0x4 - core index']
  #allocation1 [shape = 'u32[144,128]{1,0:T(1,128)}', space=vmem, size = 0x12000, scoped, tag = 'internal scratch']
  #allocation2 [shape = 'f32[1,1]{1,0:T(1,128)S(1)}', space=vmem, size = 0x200, scoped, tag = 'scoped memory for unet_multiscale_forward.9']
  %s0 = inlined_call_operand.vmem [shape: f32[225,512], index: 0, kind: input, shape index: {}]
  %s1 = inlined_call_operand.vmem [shape: f32[8,225], index: 1, kind: input, shape index: {}]
  %s2 = inlined_call_operand.vmem [shape: f32[8,1], index: 2, kind: input, shape index: {}]
  %s3 = inlined_call_operand.vmem [shape: f32[1,8], index: 3, kind: input, shape index: {}]
  %s4 = inlined_call_operand.<no memory space> [shape: f32[1,1], index: 4, kind: input, shape index: {}]
  %s5 = inlined_call_operand.hbm [shape: f32[8,512], index: 5, kind: output, shape index: {0}]
  %s6 = inlined_call_operand.hbm [shape: f32[1,512], index: 6, kind: output, shape index: {1}]
  %s7 = inlined_call_operand.vmem [shape: f32[1,512], index: 7, kind: output, shape index: {2}]
  %8 = xla_tuple %s5, %s6, %s7
  %s9 = sld [smem:[#allocation0]]
  $region92: #{unet_multiscale_forward.9} parent=0
    _
  %s11 = ssub.s32 1, %s9
  %s12 = scalar_select 0, %s11, %s9
  %v13 = vstv %s4
  %14 = vst [vmem:[#allocation2] sm:$0x1] %v13
  $region1: #{unet_multiscale_forward.9} parent=0
    #allocation3 [shape = 'u8[475136]{0}', space=vmem, size = 0x74000, scoped, tag = 'input window, operand 0']
    #allocation4 [shape = 'u8[16384]{0}', space=vmem, size = 0x4000, scoped, tag = 'output window, operand 0']
    #allocation5 [shape = 's32[2]{0}', space=sflag, size = 0x8, scoped, tag = 'scoped memory for unet_multiscale_forward.9']
    #allocation6 [shape = 'u8[2048]{0}', space=vmem, size = 0x800, scoped, tag = 'output window, operand 1']
    #allocation7 [shape = 's32[2]{0}', space=sflag, size = 0x8, scoped, tag = 'scoped memory for unet_multiscale_forward.9']
    %15 = vsyncpa [#allocation5], 0
    %s16 = scalar_lea.sflag [#allocation5], 1
    %17 = vsyncpa %s16, 0
    %18 = vsyncpa [#allocation7], 0
    %s19 = scalar_lea.sflag [#allocation7], 1
    %20 = vsyncpa %s19, 0
    loop: start=0, step=1, limit=4
    $region2: #{unet_multiscale_forward.9} parent=1 // loop_pre_header
      _
    $region3: #{unet_multiscale_forward.9} parent=1 // loop_header
      %s22 = sphi 0, %s26
      %p23 = scmp.ge.s32.totalorder %s22, 4
      %s32 = sphi 0, %s34
      %s35 = sphi 0, %s32
      %s36 = sphi 0, %s35
      %s52 = sphi 0, %s36
      %s56 = sphi 0, %s56
      %s58 = sphi 0, %s56
      %s59 = sphi 0, %s58
      %s73 = sphi 0, %s59
      %s77 = sphi 0, %s77
      %s79 = sphi 0, %s77
      %s80 = sphi 0, %s79
      %s94 = sphi 0, %s80
      %s98 = sphi 0, %s98
      %s100 = sphi 0, %s98
      %s101 = sphi 0, %s100
      %s115 = sphi 0, %s101
      %s119 = sphi 0, %s119
      %s121 = sphi 0, %s119
      %s122 = sphi 0, %s121
      %s136 = sphi 0, %s122
      %s142 = sphi 0, %s144
      %s145 = sphi 0, %s142
      %s146 = sphi 0, %s145
      %s162 = sphi 0, %s146
      %s168 = sphi 0, %s170
      %s171 = sphi 0, %s168
      %s172 = sphi 0, %s171
      %s188 = sphi 0, %s172
      %s194 = sphi 0, %s196
      %s197 = sphi 0, %s194
      %s198 = sphi 0, %s197
      %s214 = sphi 0, %s198
    $region4: #{unet_multiscale_forward.9} parent=1 // loop_header_branch
      %25 = sbr.rel (%p23) target = $region8
    $region5: #{unet_multiscale_forward.9} parent=1 // loop_body
      %s27 = ssub.s32 %s22, 1
      %s28 = ssub.s32 %s22, 2
      %s29 = sadd.s32 %s22, 1
      %s30 = ssub.s32 %s22, %s29
      %p31 = scmp.eq.s32.totalorder %s30, 0
      %s33 = sadd.s32 %s32, 1
      %s34 = scalar_select %p31, %s32, %s33
      %p37 = pneg %p31
      %p38 = scmp.eq.s32.totalorder %s22, 1
      %p39 = por %p37, %p38
      %p40 = scmp.ne.s32.totalorder %s32, %s35
      %p41 = scmp.eq.s32.totalorder %s22, 0
      %p42 = por %p40, %p41
      %p43 = scmp.ne.s32.totalorder %s32, %s35
      %p44 = scmp.eq.s32.totalorder %s27, 1
      %p45 = por %p43, %p44
      %p46 = scmp.ne.s32.totalorder %s35, %s36
      %p47 = scmp.eq.s32.totalorder %s27, 0
      %p48 = por %p46, %p47
      %p49 = scmp.ne.s32.totalorder %s35, %s36
      %p50 = scmp.eq.s32.totalorder %s28, 1
      %p51 = por %p49, %p50
      %p53 = scmp.ne.s32.totalorder %s36, %s52
      %p54 = scmp.eq.s32.totalorder %s28, 0
      %p55 = por %p53, %p54
      %s57 = sadd.s32 %s56, 1
      %p60 = scmp.eq.s32.totalorder %s22, 1
      %p61 = scmp.ne.s32.totalorder %s56, %s58
      %p62 = scmp.eq.s32.totalorder %s22, 0
      %p63 = por %p61, %p62
      %p64 = scmp.ne.s32.totalorder %s56, %s58
      %p65 = scmp.eq.s32.totalorder %s27, 1
      %p66 = por %p64, %p65
      %p67 = scmp.ne.s32.totalorder %s58, %s59
      %p68 = scmp.eq.s32.totalorder %s27, 0
      %p69 = por %p67, %p68
      %p70 = scmp.ne.s32.totalorder %s58, %s59
      %p71 = scmp.eq.s32.totalorder %s28, 1
      %p72 = por %p70, %p71
      %p74 = scmp.ne.s32.totalorder %s59, %s73
      %p75 = scmp.eq.s32.totalorder %s28, 0
      %p76 = por %p74, %p75
      %s78 = sadd.s32 %s77, 1
      %p81 = scmp.eq.s32.totalorder %s22, 1
      %p82 = scmp.ne.s32.totalorder %s77, %s79
      %p83 = scmp.eq.s32.totalorder %s22, 0
      %p84 = por %p82, %p83
      %p85 = scmp.ne.s32.totalorder %s77, %s79
      %p86 = scmp.eq.s32.totalorder %s27, 1
      %p87 = por %p85, %p86
      %p88 = scmp.ne.s32.totalorder %s79, %s80
      %p89 = scmp.eq.s32.totalorder %s27, 0
      %p90 = por %p88, %p89
      %p91 = scmp.ne.s32.totalorder %s79, %s80
      %p92 = scmp.eq.s32.totalorder %s28, 1
      %p93 = por %p91, %p92
      %p95 = scmp.ne.s32.totalorder %s80, %s94
      %p96 = scmp.eq.s32.totalorder %s28, 0
      %p97 = por %p95, %p96
      %s99 = sadd.s32 %s98, 1
      %p102 = scmp.eq.s32.totalorder %s22, 1
      %p103 = scmp.ne.s32.totalorder %s98, %s100
      %p104 = scmp.eq.s32.totalorder %s22, 0
      %p105 = por %p103, %p104
      %p106 = scmp.ne.s32.totalorder %s98, %s100
      %p107 = scmp.eq.s32.totalorder %s27, 1
      %p108 = por %p106, %p107
      %p109 = scmp.ne.s32.totalorder %s100, %s101
      %p110 = scmp.eq.s32.totalorder %s27, 0
      %p111 = por %p109, %p110
      %p112 = scmp.ne.s32.totalorder %s100, %s101
      %p113 = scmp.eq.s32.totalorder %s28, 1
      %p114 = por %p112, %p113
      %p116 = scmp.ne.s32.totalorder %s101, %s115
      %p117 = scmp.eq.s32.totalorder %s28, 0
      %p118 = por %p116, %p117
      %s120 = sadd.s32 %s119, 1
      %p123 = scmp.eq.s32.totalorder %s22, 1
      %p124 = scmp.ne.s32.totalorder %s119, %s121
      %p125 = scmp.eq.s32.totalorder %s22, 0
      %p126 = por %p124, %p125
      %p127 = scmp.ne.s32.totalorder %s119, %s121
      %p128 = scmp.eq.s32.totalorder %s27, 1
      %p129 = por %p127, %p128
      %p130 = scmp.ne.s32.totalorder %s121, %s122
      %p131 = scmp.eq.s32.totalorder %s27, 0
      %p132 = por %p130, %p131
      %p133 = scmp.ne.s32.totalorder %s121, %s122
      %p134 = scmp.eq.s32.totalorder %s28, 1
      %p135 = por %p133, %p134
      %p137 = scmp.ne.s32.totalorder %s122, %s136
      %p138 = scmp.eq.s32.totalorder %s28, 0
      %p139 = por %p137, %p138
      %s140 = ssub.s32 %s22, %s29
      %p141 = scmp.eq.s32.totalorder %s140, 0
      %s143 = sadd.s32 %s142, 1
      %s144 = scalar_select %p141, %s142, %s143
      %p147 = pneg %p141
      %p148 = scmp.eq.s32.totalorder %s22, 1
      %p149 = por %p147, %p148
      %p150 = scmp.ne.s32.totalorder %s142, %s145
      %p151 = scmp.eq.s32.totalorder %s22, 0
      %p152 = por %p150, %p151
      %p153 = scmp.ne.s32.totalorder %s142, %s145
      %p154 = scmp.eq.s32.totalorder %s27, 1
      %p155 = por %p153, %p154
      %p156 = scmp.ne.s32.totalorder %s145, %s146
      %p157 = scmp.eq.s32.totalorder %s27, 0
      %p158 = por %p156, %p157
      %p159 = scmp.ne.s32.totalorder %s145, %s146
      %p160 = scmp.eq.s32.totalorder %s28, 1
      %p161 = por %p159, %p160
      %p163 = scmp.ne.s32.totalorder %s146, %s162
      %p164 = scmp.eq.s32.totalorder %s28, 0
      %p165 = por %p163, %p164
      %s166 = ssub.s32 %s22, %s29
      %p167 = scmp.eq.s32.totalorder %s166, 0
      %s169 = sadd.s32 %s168, 1
      %s170 = scalar_select %p167, %s168, %s169
      %p173 = pneg %p167
      %p174 = scmp.eq.s32.totalorder %s22, 1
      %p175 = por %p173, %p174
      %p176 = scmp.ne.s32.totalorder %s168, %s171
      %p177 = scmp.eq.s32.totalorder %s22, 0
      %p178 = por %p176, %p177
      %p179 = scmp.ne.s32.totalorder %s168, %s171
      %p180 = scmp.eq.s32.totalorder %s27, 1
      %p181 = por %p179, %p180
      %p182 = scmp.ne.s32.totalorder %s171, %s172
      %p183 = scmp.eq.s32.totalorder %s27, 0
      %p184 = por %p182, %p183
      %p185 = scmp.ne.s32.totalorder %s171, %s172
      %p186 = scmp.eq.s32.totalorder %s28, 1
      %p187 = por %p185, %p186
      %p189 = scmp.ne.s32.totalorder %s172, %s188
      %p190 = scmp.eq.s32.totalorder %s28, 0
      %p191 = por %p189, %p190
      %s192 = ssub.s32 %s22, %s29
      %p193 = scmp.eq.s32.totalorder %s192, 0
      %s195 = sadd.s32 %s194, 1
      %s196 = scalar_select %p193, %s194, %s195
      %p199 = pneg %p193
      %p200 = scmp.eq.s32.totalorder %s22, 1
      %p201 = por %p199, %p200
      %p202 = scmp.ne.s32.totalorder %s194, %s197
      %p203 = scmp.eq.s32.totalorder %s22, 0
      %p204 = por %p202, %p203
      %p205 = scmp.ne.s32.totalorder %s194, %s197
      %p206 = scmp.eq.s32.totalorder %s27, 1
      %p207 = por %p205, %p206
      %p208 = scmp.ne.s32.totalorder %s197, %s198
      %p209 = scmp.eq.s32.totalorder %s27, 0
      %p210 = por %p208, %p209
      %p211 = scmp.ne.s32.totalorder %s197, %s198
      %p212 = scmp.eq.s32.totalorder %s28, 1
      %p213 = por %p211, %p212
      %p215 = scmp.ne.s32.totalorder %s198, %s214
      %p216 = scmp.eq.s32.totalorder %s28, 0
      %p217 = por %p215, %p216
      %p218 = scmp.le.s32.totalorder 1, %s22
      %p219 = scmp.lt.s32.totalorder %s22, 3
      %p220 = pnand %p218, %p219
      %p221 = pneg %p220
      // Predicated region
      $region9: #{unet_multiscale_forward.9} parent=5 // pred_check
        _
      $region10: #{unet_multiscale_forward.9} parent=5 // pred_check_branch
        %223 = sbr.rel (%p220) target = $region12
      $region11: #{unet_multiscale_forward.9} parent=5 // pred_region
        %s224 = ssub.s32 %s22, 1
        // Predicated region
        $region13: #{unet_multiscale_forward.9} parent=11 // pred_check
          %p225 = pneg %p69
        $region14: #{unet_multiscale_forward.9} parent=11 // pred_check_branch
          %227 = sbr.rel (%p225) target = $region16
        $region15: #{unet_multiscale_forward.9} parent=11 // pred_region
          _
        $region16: #{unet_multiscale_forward.9} parent=11 // pred_fallthru
          _
        // Predicated region
        $region17: #{unet_multiscale_forward.9} parent=11 // pred_check
          %p228 = pneg %p90
        $region18: #{unet_multiscale_forward.9} parent=11 // pred_check_branch
          %230 = sbr.rel (%p228) target = $region20
        $region19: #{unet_multiscale_forward.9} parent=11 // pred_region
          _
        $region20: #{unet_multiscale_forward.9} parent=11 // pred_fallthru
          _
        // Predicated region
        $region21: #{unet_multiscale_forward.9} parent=11 // pred_check
          %p231 = pneg %p111
        $region22: #{unet_multiscale_forward.9} parent=11 // pred_check_branch
          %233 = sbr.rel (%p231) target = $region24
        $region23: #{unet_multiscale_forward.9} parent=11 // pred_region
          _
        $region24: #{unet_multiscale_forward.9} parent=11 // pred_fallthru
          _
        // Predicated region
        $region25: #{unet_multiscale_forward.9} parent=11 // pred_check
          %p234 = pneg %p132
        $region26: #{unet_multiscale_forward.9} parent=11 // pred_check_branch
          %236 = sbr.rel (%p234) target = $region28
        $region27: #{unet_multiscale_forward.9} parent=11 // pred_region
          _
        $region28: #{unet_multiscale_forward.9} parent=11 // pred_fallthru
          _
      $region12: #{unet_multiscale_forward.9} parent=5 // pred_fallthru
        _
      %p237 = scmp.lt.s32.totalorder %s22, 2
      // Predicated region
      $region29: #{unet_multiscale_forward.9} parent=5 // pred_check
        %p238 = pneg %p237
      $region30: #{unet_multiscale_forward.9} parent=5 // pred_check_branch
        %240 = sbr.rel (%p238) target = $region32
      $region31: #{unet_multiscale_forward.9} parent=5 // pred_region
        // Predicated region
        $region33: #{unet_multiscale_forward.9} parent=31 // pred_check
          %p241 = pneg %p42
        $region34: #{unet_multiscale_forward.9} parent=31 // pred_check_branch
          %243 = sbr.rel (%p241) target = $region36
        $region35: #{unet_multiscale_forward.9} parent=31 // pred_region
          %s244 = sand.u32 %s32, 1
          %s245 = sand.u32 %s32, 1
          %s246 = smul.addr %s245, 464
          %s247 = scalar_lea.vmem [#allocation3], %s246
          %s248 = smul.u32 2, %s22
          %s249 = smul.addr %s248, 8
          %s250 = scalar_lea.vmem %s0, %s249
          // Predicated region
          $region37: #{unet_multiscale_forward.9} parent=35 // pred_check
            _
          $region38: #{unet_multiscale_forward.9} parent=35 // pred_check_branch
            %252 = sbr.rel (0) target = $region40
          $region39: #{unet_multiscale_forward.9} parent=35 // pred_region
            // Predicated region
            $region41: #{unet_multiscale_forward.9} parent=39 // pred_check
              _
            $region42: #{unet_multiscale_forward.9} parent=39 // pred_check_branch
              %254 = sbr.rel (0) target = $region44
            $region43: #{unet_multiscale_forward.9} parent=39 // pred_region
              loop: start=0, step=1, limit=1
              $region45: #{unet_multiscale_forward.9} parent=43 // loop_pre_header
                _
              $region46: #{unet_multiscale_forward.9} parent=43 // loop_header
                %s256 = sphi 0, %s260
                %p257 = scmp.ge.s32.totalorder %s256, 1
                %s261 = sphi %s250, %s250
                %s262 = sphi %s247, %s247
              $region47: #{unet_multiscale_forward.9} parent=43 // loop_header_branch
                %259 = sbr.rel (%p257) target = $region51
              $region48: #{unet_multiscale_forward.9} parent=43 // loop_body
                %v263 = vld [vmem:[%s261] sm:$0xff]
                %264 = vst [vmem:[%s262] sm:$0xff] %v263
                %v265 = vld [vmem:[%s261 + $0x8] sm:$0xff]
                %266 = vst [vmem:[%s262 + $0x8] sm:$0xff] %v265
                %v267 = vld [vmem:[%s261 + $0x20] sm:$0xff]
                %268 = vst [vmem:[%s262 + $0x10] sm:$0xff] %v267
                %v269 = vld [vmem:[%s261 + $0x28] sm:$0xff]
                %270 = vst [vmem:[%s262 + $0x18] sm:$0xff] %v269
                %v271 = vld [vmem:[%s261 + $0x40] sm:$0xff]
                %272 = vst [vmem:[%s262 + $0x20] sm:$0xff] %v271
                %v273 = vld [vmem:[%s261 + $0x48] sm:$0xff]
                %274 = vst [vmem:[%s262 + $0x28] sm:$0xff] %v273
                %v275 = vld [vmem:[%s261 + $0x60] sm:$0xff]
                %276 = vst [vmem:[%s262 + $0x30] sm:$0xff] %v275
                %v277 = vld [vmem:[%s261 + $0x68] sm:$0xff]
                %278 = vst [vmem:[%s262 + $0x38] sm:$0xff] %v277
                %v279 = vld [vmem:[%s261 + $0x80] sm:$0xff]
                %280 = vst [vmem:[%s262 + $0x40] sm:$0xff] %v279
                %v281 = vld [vmem:[%s261 + $0x88] sm:$0xff]
                %282 = vst [vmem:[%s262 + $0x48] sm:$0xff] %v281
                %v283 = vld [vmem:[%s261 + $0xa0] sm:$0xff]
                %284 = vst [vmem:[%s262 + $0x50] sm:$0xff] %v283
                %v285 = vld [vmem:[%s261 + $0xa8] sm:$0xff]
                %286 = vst [vmem:[%s262 + $0x58] sm:$0xff] %v285
                %v287 = vld [vmem:[%s261 + $0xc0] sm:$0xff]
                %288 = vst [vmem:[%s262 + $0x60] sm:$0xff] %v287
                %v289 = vld [vmem:[%s261 + $0xc8] sm:$0xff]
                %290 = vst [vmem:[%s262 + $0x68] sm:$0xff] %v289
                %v291 = vld [vmem:[%s261 + $0xe0] sm:$0xff]
                %292 = vst [vmem:[%s262 + $0x70] sm:$0xff] %v291
                %v293 = vld [vmem:[%s261 + $0xe8] sm:$0xff]
                %294 = vst [vmem:[%s262 + $0x78] sm:$0xff] %v293
                %v295 = vld [vmem:[%s261 + $0x100] sm:$0xff]
                %296 = vst [vmem:[%s262 + $0x80] sm:$0xff] %v295
                %v297 = vld [vmem:[%s261 + $0x108] sm:$0xff]
                %298 = vst [vmem:[%s262 + $0x88] sm:$0xff] %v297
                %v299 = vld [vmem:[%s261 + $0x120] sm:$0xff]
                %300 = vst [vmem:[%s262 + $0x90] sm:$0xff] %v299
                %v301 = vld [vmem:[%s261 + $0x128] sm:$0xff]
                %302 = vst [vmem:[%s262 + $0x98] sm:$0xff] %v301
                %v303 = vld [vmem:[%s261 + $0x140] sm:$0xff]
                %304 = vst [vmem:[%s262 + $0xa0] sm:$0xff] %v303
                %v305 = vld [vmem:[%s261 + $0x148] sm:$0xff]
                %306 = vst [vmem:[%s262 + $0xa8] sm:$0xff] %v305
                %v307 = vld [vmem:[%s261 + $0x160] sm:$0xff]
                %308 = vst [vmem:[%s262 + $0xb0] sm:$0xff] %v307
                %v309 = vld [vmem:[%s261 + $0x168] sm:$0xff]
                %310 = vst [vmem:[%s262 + $0xb8] sm:$0xff] %v309
                %v311 = vld [vmem:[%s261 + $0x180] sm:$0xff]
                %312 = vst [vmem:[%s262 + $0xc0] sm:$0xff] %v311
                %v313 = vld [vmem:[%s261 + $0x188] sm:$0xff]
                %314 = vst [vmem:[%s262 + $0xc8] sm:$0xff] %v313
                %v315 = vld [vmem:[%s261 + $0x1a0] sm:$0xff]
                %316 = vst [vmem:[%s262 + $0xd0] sm:$0xff] %v315
                %v317 = vld [vmem:[%s261 + $0x1a8] sm:$0xff]
                %318 = vst [vmem:[%s262 + $0xd8] sm:$0xff] %v317
                %v319 = vld [vmem:[%s261 + $0x1c0] sm:$0xff]
                %320 = vst [vmem:[%s262 + $0xe0] sm:$0xff] %v319
                %v321 = vld [vmem:[%s261 + $0x1c8] sm:$0xff]
                %322 = vst [vmem:[%s262 + $0xe8] sm:$0xff] %v321
                %v323 = vld [vmem:[%s261 + $0x1e0] sm:$0xff]
                %324 = vst [vmem:[%s262 + $0xf0] sm:$0xff] %v323
                %v325 = vld [vmem:[%s261 + $0x1e8] sm:$0xff]
                %326 = vst [vmem:[%s262 + $0xf8] sm:$0xff] %v325
                %v327 = vld [vmem:[%s261 + $0x200] sm:$0xff]
                %328 = vst [vmem:[%s262 + $0x100] sm:$0xff] %v327
                %v329 = vld [vmem:[%s261 + $0x208] sm:$0xff]
                %330 = vst [vmem:[%s262 + $0x108] sm:$0xff] %v329
                %v331 = vld [vmem:[%s261 + $0x220] sm:$0xff]
                %332 = vst [vmem:[%s262 + $0x110] sm:$0xff] %v331
                %v333 = vld [vmem:[%s261 + $0x228] sm:$0xff]
                %334 = vst [vmem:[%s262 + $0x118] sm:$0xff] %v333
                %v335 = vld [vmem:[%s261 + $0x240] sm:$0xff]
                %336 = vst [vmem:[%s262 + $0x120] sm:$0xff] %v335
                %v337 = vld [vmem:[%s261 + $0x248] sm:$0xff]
                %338 = vst [vmem:[%s262 + $0x128] sm:$0xff] %v337
                %v339 = vld [vmem:[%s261 + $0x260] sm:$0xff]
                %340 = vst [vmem:[%s262 + $0x130] sm:$0xff] %v339
                %v341 = vld [vmem:[%s261 + $0x268] sm:$0xff]
                %342 = vst [vmem:[%s262 + $0x138] sm:$0xff] %v341
                %v343 = vld [vmem:[%s261 + $0x280] sm:$0xff]
                %344 = vst [vmem:[%s262 + $0x140] sm:$0xff] %v343
                %v345 = vld [vmem:[%s261 + $0x288] sm:$0xff]
                %346 = vst [vmem:[%s262 + $0x148] sm:$0xff] %v345
                %v347 = vld [vmem:[%s261 + $0x2a0] sm:$0xff]
                %348 = vst [vmem:[%s262 + $0x150] sm:$0xff] %v347
                %v349 = vld [vmem:[%s261 + $0x2a8] sm:$0xff]
                %350 = vst [vmem:[%s262 + $0x158] sm:$0xff] %v349
                %v351 = vld [vmem:[%s261 + $0x2c0] sm:$0xff]
                %352 = vst [vmem:[%s262 + $0x160] sm:$0xff] %v351
                %v353 = vld [vmem:[%s261 + $0x2c8] sm:$0xff]
                %354 = vst [vmem:[%s262 + $0x168] sm:$0xff] %v353
                %v355 = vld [vmem:[%s261 + $0x2e0] sm:$0xff]
                %356 = vst [vmem:[%s262 + $0x170] sm:$0xff] %v355
                %v357 = vld [vmem:[%s261 + $0x2e8] sm:$0xff]
                %358 = vst [vmem:[%s262 + $0x178] sm:$0xff] %v357
                %v359 = vld [vmem:[%s261 + $0x300] sm:$0xff]
                %360 = vst [vmem:[%s262 + $0x180] sm:$0xff] %v359
                %v361 = vld [vmem:[%s261 + $0x308] sm:$0xff]
                %362 = vst [vmem:[%s262 + $0x188] sm:$0xff] %v361
                %v363 = vld [vmem:[%s261 + $0x320] sm:$0xff]
                %364 = vst [vmem:[%s262 + $0x190] sm:$0xff] %v363
                %v365 = vld [vmem:[%s261 + $0x328] sm:$0xff]
                %366 = vst [vmem:[%s262 + $0x198] sm:$0xff] %v365
                %v367 = vld [vmem:[%s261 + $0x340] sm:$0xff]
                %368 = vst [vmem:[%s262 + $0x1a0] sm:$0xff] %v367
                %v369 = vld [vmem:[%s261 + $0x348] sm:$0xff]
                %370 = vst [vmem:[%s262 + $0x1a8] sm:$0xff] %v369
                %v371 = vld [vmem:[%s261 + $0x360] sm:$0xff]
                %372 = vst [vmem:[%s262 + $0x1b0] sm:$0xff] %v371
                %v373 = vld [vmem:[%s261 + $0x368] sm:$0xff]
                %374 = vst [vmem:[%s262 + $0x1b8] sm:$0xff] %v373
                %v375 = vld [vmem:[%s261 + $0x380] sm:$0xff]
                %376 = vst [vmem:[%s262 + $0x1c0] sm:$0xff] %v375
                %v377 = vld [vmem:[%s261 + $0x388] sm:$0xff]
                %378 = vst [vmem:[%s262 + $0x1c8] sm:$0xff] %v377
              $region49: #{unet_multiscale_forward.9} parent=43 // loop_footer
                %s260 = sadd.s32 1, %s256
              $region50: #{unet_multiscale_forward.9} parent=43 // loop_footer_branch
                %255 = sbr.rel target = $region46
              $region51: #{unet_multiscale_forward.9} parent=43 // loop_exit
                _
            $region44: #{unet_multiscale_forward.9} parent=39 // pred_fallthru
              _
            // Predicated region
            $region52: #{unet_multiscale_forward.9} parent=39 // pred_check
              _
            $region53: #{unet_multiscale_forward.9} parent=39 // pred_check_branch
              %380 = sbr.rel target = $region55
            $region54: #{unet_multiscale_forward.9} parent=39 // pred_region
              _
            $region55: #{unet_multiscale_forward.9} parent=39 // pred_fallthru
              _
          $region40: #{unet_multiscale_forward.9} parent=35 // pred_fallthru
            _
          %381 = vnop
        $region36: #{unet_multiscale_forward.9} parent=31 // pred_fallthru
          _
      $region32: #{unet_multiscale_forward.9} parent=5 // pred_fallthru
        _
      %p382 = scmp.le.s32.totalorder 1, %s22
      %p383 = scmp.lt.s32.totalorder %s22, 3
      %p384 = pnand %p382, %p383
      %p385 = pneg %p384
      // Predicated region
      $region56: #{unet_multiscale_forward.9} parent=5 // pred_check
        _
      $region57: #{unet_multiscale_forward.9} parent=5 // pred_check_branch
        %387 = sbr.rel (%p384) target = $region59
      $region58: #{unet_multiscale_forward.9} parent=5 // pred_region
        %s388 = ssub.s32 %s22, 1
        %s389 = sand.u32 %s35, 1
        %s390 = sand.u32 %s35, 1
        %s391 = smul.addr %s390, 464
        %s392 = scalar_lea.vmem [#allocation3], %s391
        // Predicated region
        $region60: #{unet_multiscale_forward.9} parent=58 // pred_check
          %p393 = pneg %p48
        $region61: #{unet_multiscale_forward.9} parent=58 // pred_check_branch
          %395 = sbr.rel (%p393) target = $region63
        $region62: #{unet_multiscale_forward.9} parent=58 // pred_region
          _
        $region63: #{unet_multiscale_forward.9} parent=58 // pred_fallthru
          _
        %s396 = sand.u32 %s35, 1
        %s397 = sand.u32 %s35, 1
        %s398 = smul.addr %s397, 464
        %s399 = scalar_lea.vmem [#allocation3], %s398
        %p400 = pneg %p48
        %p401 = pneg %p45
        %p402 = pneg %p69
        %p403 = pneg %p66
        %p404 = pneg %p90
        %p405 = pneg %p87
        %p406 = pneg %p111
        %p407 = pneg %p108
        %p408 = pneg %p132
        %p409 = pneg %p129
        %p410 = pneg %p158
        %p411 = pneg %p155
        %s412 = sand.u32 %s145, 1
        %s413 = scalar_lea.sflag [#allocation5], %s412
        %s414 = sand.u32 %s145, 1
        %s415 = smul.addr %s414, 16
        %s416 = scalar_lea.vmem [#allocation4], %s415
        %p417 = pneg %p184
        %p418 = pneg %p181
        %s419 = sand.u32 %s171, 1
        %s420 = scalar_lea.sflag [#allocation7], %s419
        %s421 = sand.u32 %s171, 1
        %s422 = smul.addr %s421, 2
        %s423 = scalar_lea.vmem [#allocation6], %s422
        %p424 = pneg %p210
        %p425 = pneg %p207
        %s426 = smul.u32 2, %s27
        %p427 = scmp.lt.s32.totalorder %s426, 3
        %s428 = scalar_select %p427, %s426, 3
        %s429 = scalar_lea.vmem %s7, %s428
        %s430 = smul.u32 2, %s27
        %s431 = smul.u32 2, %s27
        %s432 = smul.u32 2, %s27
        %s433 = smul.u32 2, %s27
        %p434 = scmp.lt.s32.totalorder %s433, 3
        %s435 = scalar_select %p434, %s433, 3
        %s436 = scalar_lea.vmem %s7, %s435
        %s437 = smul.u32 2, %s27
        %v438 = vld [vmem:[%s1] sm:$0xff]
        %v439 = vld [vmem:[%s1 + $0x8] sm:$0xff]
        %v440 = vld [vmem:[%s392] sm:$0xff]
        %v441 = vld [vmem:[%s392 + $0x8] sm:$0xff]
        %v442 = vld [vmem:[%s392 + $0x10] sm:$0xff]
        %v443 = vld [vmem:[%s392 + $0x18] sm:$0xff]
        %v444 = vld [vmem:[%s392 + $0x20] sm:$0xff]
        %v445 = vld [vmem:[%s392 + $0x28] sm:$0xff]
        %v446 = vld [vmem:[%s392 + $0x30] sm:$0xff]
        %v447 = vld [vmem:[%s392 + $0x38] sm:$0xff]
        %v448 = vld [vmem:[%s392 + $0x40] sm:$0xff]
        %v449 = vld [vmem:[%s392 + $0x48] sm:$0xff]
        %v450 = vld [vmem:[%s392 + $0x50] sm:$0xff]
        %v451 = vld [vmem:[%s392 + $0x58] sm:$0xff]
        %v452 = vld [vmem:[%s392 + $0x60] sm:$0xff]
        %v453 = vld [vmem:[%s392 + $0x68] sm:$0xff]
        %v454 = vld [vmem:[%s392 + $0x70] sm:$0xff]
        %v455 = vld [vmem:[%s392 + $0x78] sm:$0xff]
        %v456 = vld [vmem:[%s392 + $0x80] sm:$0xff]
        %v457 = vld [vmem:[%s392 + $0x88] sm:$0xff]
        %v458 = vld [vmem:[%s392 + $0x90] sm:$0xff]
        %v459 = vld [vmem:[%s392 + $0x98] sm:$0xff]
        %v460 = vld [vmem:[%s392 + $0xa0] sm:$0xff]
        %v461 = vld [vmem:[%s392 + $0xa8] sm:$0xff]
        %v462 = vld [vmem:[%s392 + $0xb0] sm:$0xff]
        %v463 = vld [vmem:[%s392 + $0xb8] sm:$0xff]
        %v464 = vld [vmem:[%s392 + $0xc0] sm:$0xff]
        %v465 = vld [vmem:[%s392 + $0xc8] sm:$0xff]
        %v466 = vld [vmem:[%s392 + $0xd0] sm:$0xff]
        %v467 = vld [vmem:[%s392 + $0xd8] sm:$0xff]
        %v468 = vld [vmem:[%s392 + $0xe0] sm:$0xff]
        %v469 = vld [vmem:[%s392 + $0xe8] sm:$0xff]
        %v470 = vld [vmem:[%s392 + $0xf0] sm:$0xff]
        %v471 = vld [vmem:[%s392 + $0xf8] sm:$0xff]
        %v472 = vld [vmem:[%s392 + $0x100] sm:$0xff]
        %v473 = vld [vmem:[%s392 + $0x108] sm:$0xff]
        %v474 = vld [vmem:[%s392 + $0x110] sm:$0xff]
        %v475 = vld [vmem:[%s392 + $0x118] sm:$0xff]
        %v476 = vld [vmem:[%s392 + $0x120] sm:$0xff]
        %v477 = vld [vmem:[%s392 + $0x128] sm:$0xff]
        %v478 = vld [vmem:[%s392 + $0x130] sm:$0xff]
        %v479 = vld [vmem:[%s392 + $0x138] sm:$0xff]
        %v480 = vld [vmem:[%s392 + $0x140] sm:$0xff]
        %v481 = vld [vmem:[%s392 + $0x148] sm:$0xff]
        %v482 = vld [vmem:[%s392 + $0x150] sm:$0xff]
        %v483 = vld [vmem:[%s392 + $0x158] sm:$0xff]
        %v484 = vld [vmem:[%s392 + $0x160] sm:$0xff]
        %v485 = vld [vmem:[%s392 + $0x168] sm:$0xff]
        %v486 = vld [vmem:[%s392 + $0x170] sm:$0xff]
        %v487 = vld [vmem:[%s392 + $0x178] sm:$0xff]
        %v488 = vld [vmem:[%s392 + $0x180] sm:$0xff]
        %v489 = vld [vmem:[%s392 + $0x188] sm:$0xff]
        %v490 = vld [vmem:[%s392 + $0x190] sm:$0xff]
        %v491 = vld [vmem:[%s392 + $0x198] sm:$0xff]
        %v492 = vld [vmem:[%s392 + $0x1a0] sm:$0xff]
        %v493 = vld [vmem:[%s392 + $0x1a8] sm:$0xff]
        %v494 = vld [vmem:[%s392 + $0x1b0] sm:$0xff]
        %v495 = vld [vmem:[%s392 + $0x1b8] sm:$0xff]
        %v496 = vld [vmem:[%s392 + $0x1c0] sm:$0x1]
        %v497 = vld [vmem:[%s392 + $0x1c8] sm:$0x1]
        %v498 = vld [vmem:[%s2] sm:$0xff]
        %500 = vset.pattern.permute.xlu0 0
        %501 = vperm.xlu0 %500, %v498
        %v502 = vpop.permute.xlu0 %501
        %vm504 = vcmask 793600
        %v506 = vsel %vm504, %v439, 0
        %vm508 = vcmask 1040384
        %v510 = vsel %vm508, %v496, 0
        %v513 = vsel %vm508, %v497, 0
        %515 = vmatprep.subr.mxu0 %v441
        %516 = vmatpush1.msra.mxu0 %v440
        %517 = vmatprep.subr.mxu0 %v443
        %518 = vmatpush1.msra.mxu0 %v442
        %519 = vmatprep.subr.mxu0 %v445
        %520 = vmatpush1.msra.mxu0 %v444
        %521 = vmatprep.subr.mxu0 %v447
        %522 = vmatpush1.msra.mxu0 %v446
        %523 = vmatprep.subr.mxu0 %v449
        %524 = vmatpush1.msra.mxu0 %v448
        %525 = vmatprep.subr.mxu0 %v451
        %526 = vmatpush1.msra.mxu0 %v450
        %527 = vmatprep.subr.mxu0 %v453
        %528 = vmatpush1.msra.mxu0 %v452
        %529 = vmatprep.subr.mxu0 %v455
        %530 = vmatpush1.msra.mxu0 %v454
        %531 = vmatprep.subr.mxu0 %v457
        %532 = vmatpush1.msra.mxu0 %v456
        %533 = vmatprep.subr.mxu0 %v459
        %534 = vmatpush1.msra.mxu0 %v458
        %535 = vmatprep.subr.mxu0 %v461
        %536 = vmatpush1.msra.mxu0 %v460
        %537 = vmatprep.subr.mxu0 %v463
        %538 = vmatpush1.msra.mxu0 %v462
        %539 = vmatprep.subr.mxu0 %v465
        %540 = vmatpush1.msra.mxu0 %v464
        %541 = vmatprep.subr.mxu0 %v467
        %542 = vmatpush1.msra.mxu0 %v466
        %543 = vmatprep.subr.mxu0 %v469
        %544 = vmatpush1.msra.mxu0 %v468
        %545 = vmatprep.subr.mxu0 %v471
        %546 = vmatpush1.msra.mxu0 %v470
        %547 = vmatprep.subr.mxu0 %v473
        %548 = vmatpush1.msra.mxu0 %v472
        %549 = vmatprep.subr.mxu0 %v475
        %550 = vmatpush1.msra.mxu0 %v474
        %551 = vmatprep.subr.mxu0 %v477
        %552 = vmatpush1.msra.mxu0 %v476
        %553 = vmatprep.subr.mxu0 %v479
        %554 = vmatpush1.msra.mxu0 %v478
        %555 = vmatprep.subr.mxu0 %v481
        %556 = vmatpush1.msra.mxu0 %v480
        %557 = vmatprep.subr.mxu0 %v483
        %558 = vmatpush1.msra.mxu0 %v482
        %559 = vmatprep.subr.mxu0 %v485
        %560 = vmatpush1.msra.mxu0 %v484
        %561 = vmatprep.subr.mxu0 %v487
        %562 = vmatpush1.msra.mxu0 %v486
        %563 = vmatprep.subr.mxu0 %v489
        %564 = vmatpush1.msra.mxu0 %v488
        %565 = vmatprep.subr.mxu0 %v491
        %566 = vmatpush1.msra.mxu0 %v490
        %567 = vmatprep.subr.mxu0 %v493
        %568 = vmatpush1.msra.mxu0 %v492
        %569 = vmatprep.subr.mxu0 %v495
        %570 = vmatpush1.msra.mxu0 %v494
        %571 = vmatprep.subr.mxu0 %v513
        %572 = vmatpush1.msra.mxu0 %v510
        %573 = vmatprep.subr.mxu0 0.0
        %574 = vmatpush1.msra.mxu0 0.0
        %575 = vmatprep.subr.mxu0 0.0
        %576 = vmatpush1.msra.mxu0 0.0
        %577 = vmatprep.subr.mxu0 0.0
        %578 = vmatpush1.msra.mxu0 0.0
        %579 = vmatprep.mubr.f32.mxu0 %v506
        %580 = vmatmul.mubr.f32.gmra.mrb[0].mxu0 %v438
        %v581 = vpop.f32.mrb[0].mxu0
        %v582 = vadd.f32 %v502, %v581
        %v583 = vpop.f32.mrb[0].mxu0
        %v584 = vadd.f32 %v502, %v583
        %585 = vdwg.mxu0
        %v586 = vmax.f32 %v582, 0.0
        %v587 = vmax.f32 %v584, 0.0
        %588 = vst [vmem:[%s416] sm:$0xff] %v586
        %589 = vst [vmem:[%s416 + $0x8] sm:$0xff] %v587
        %v590 = vld [vmem:[%s3] sm:$0x1]
        %v591 = vld [vmem:[#allocation2] sm:$0x1]
        %593 = vset.pattern.permute.xlu0 0
        %594 = vperm.xlu0 %593, %v591
        %v595 = vpop.permute.xlu0 %594
        %v597 = vlaneseq
        %v598 = vshrl.u32 %v597, 7
        %v599 = vsub.s32 0, %v598
        %v600 = vrot.slane %v595, %v599
        %vm601 = vcmask 64512
        %v603 = vsel %vm601, %v590, 0
        %605 = vmatprep.subr.mxu0 %v587
        %606 = vmatpush1.msra.mxu0 %v586
        %607 = vmatprep.subr.mxu0 0.0
        %608 = vmatpush1.msra.mxu0 0.0
        %609 = vmatprep.subr.mxu0 0.0
        %610 = vmatpush1.msra.mxu0 0.0
        %611 = vmatprep.subr.mxu0 0.0
        %612 = vmatpush1.msra.mxu0 0.0
        %613 = vmatprep.subr.mxu0 0.0
        %614 = vmatpush1.msra.mxu0 0.0
        %615 = vmatprep.subr.mxu0 0.0
        %616 = vmatpush1.msra.mxu0 0.0
        %617 = vmatprep.subr.mxu0 0.0
        %618 = vmatpush1.msra.mxu0 0.0
        %619 = vmatprep.subr.mxu0 0.0
        %620 = vmatpush1.msra.mxu0 0.0
        %621 = vmatprep.subr.mxu0 0.0
        %622 = vmatpush1.msra.mxu0 0.0
        %623 = vmatprep.subr.mxu0 0.0
        %624 = vmatpush1.msra.mxu0 0.0
        %625 = vmatprep.subr.mxu0 0.0
        %626 = vmatpush1.msra.mxu0 0.0
        %627 = vmatprep.subr.mxu0 0.0
        %628 = vmatpush1.msra.mxu0 0.0
        %629 = vmatprep.subr.mxu0 0.0
        %630 = vmatpush1.msra.mxu0 0.0
        %631 = vmatprep.subr.mxu0 0.0
        %632 = vmatpush1.msra.mxu0 0.0
        %633 = vmatprep.subr.mxu0 0.0
        %634 = vmatpush1.msra.mxu0 0.0
        %635 = vmatprep.subr.mxu0 0.0
        %636 = vmatpush1.msra.mxu0 0.0
        %637 = vmatprep.subr.mxu0 0.0
        %638 = vmatpush1.msra.mxu0 0.0
        %639 = vmatprep.subr.mxu0 0.0
        %640 = vmatpush1.msra.mxu0 0.0
        %641 = vmatprep.subr.mxu0 0.0
        %642 = vmatpush1.msra.mxu0 0.0
        %643 = vmatprep.subr.mxu0 0.0
        %644 = vmatpush1.msra.mxu0 0.0
        %645 = vmatprep.subr.mxu0 0.0
        %646 = vmatpush1.msra.mxu0 0.0
        %647 = vmatprep.subr.mxu0 0.0
        %648 = vmatpush1.msra.mxu0 0.0
        %649 = vmatprep.subr.mxu0 0.0
        %650 = vmatpush1.msra.mxu0 0.0
        %651 = vmatprep.subr.mxu0 0.0
        %652 = vmatpush1.msra.mxu0 0.0
        %653 = vmatprep.subr.mxu0 0.0
        %654 = vmatpush1.msra.mxu0 0.0
        %655 = vmatprep.subr.mxu0 0.0
        %656 = vmatpush1.msra.mxu0 0.0
        %657 = vmatprep.subr.mxu0 0.0
        %658 = vmatpush1.msra.mxu0 0.0
        %659 = vmatprep.subr.mxu0 0.0
        %660 = vmatpush1.msra.mxu0 0.0
        %661 = vmatprep.subr.mxu0 0.0
        %662 = vmatpush1.msra.mxu0 0.0
        %663 = vmatprep.subr.mxu0 0.0
        %664 = vmatpush1.msra.mxu0 0.0
        %665 = vmatprep.subr.mxu0 0.0
        %666 = vmatpush1.msra.mxu0 0.0
        %667 = vmatprep.subr.mxu0 0.0
        %668 = vmatpush1.msra.mxu0 0.0
        %669 = vmatprep.mubr.f32.mxu0 0.0
        %670 = vmatmul.mubr.f32.gmra.mrb[0].mxu0 %v603
        %v671 = vpop.f32.mrb[0].mxu0
        %v672 = vadd.f32 %v600, %v671
        %v673 = vpop.f32.mrb[0].mxu0
        %v674 = vadd.f32 %v600, %v673
        %675 = vdwg.mxu0
        %v678 = vcombine.low %v672, %v674
        %v680 = vunpack.c.l.s4 1966171168
        %v681 = vunpack.c.0.s8 %v680
        %v682 = vlaneseq
        %v683 = vshrl.u32 %v682, 7
        %v684 = vsub.s32 %v681, %v683
        %v685 = vrot.slane %v678, %v684
        %v687 = vunpack.c.l.s4 1966171168
        %v688 = vunpack.c.0.s8 %v687
        %v689 = vlaneseq
        %v690 = vshrl.u32 %v689, 7
        %v691 = vsub.s32 %v688, %v690
        %v692 = vrot.slane %v685, %v691
        %v694 = vlaneseq
        %vm695 = vcmp.ge.s32.totalorder %v694, 0
        %vm696 = vcmp.lt.s32.totalorder %v694, 256
        %vm697 = vmand %vm695, %vm696
        %698 = vst.msk [vmem:[%s423] sm:$0x3] %vm697, %v692
        %v699 = vxor.u32 %v672, 2147483648
        %v700 = vxor.u32 %v674, 2147483648
        %v701 = vmul.f32 %v699, 1.442695
        %v702 = vpow.pop %v701
        %v703 = vmul.f32 %v700, 1.442695
        %v704 = vpow.pop %v703
        %v705 = vadd.f32 %v702, 1.0
        %v706 = vadd.f32 %v704, 1.0
        %v707 = vrcp.pop %v705
        %v708 = vmul.f32 1.0, %v707
        %v709 = vrcp.pop %v706
        %v710 = vmul.f32 1.0, %v709
        %v713 = vcombine.low %v708, %v710
        %v715 = vunpack.c.l.s4 1966171168
        %v716 = vunpack.c.0.s8 %v715
        %v717 = vlaneseq
        %v718 = vshrl.u32 %v717, 7
        %v719 = vsub.s32 %v716, %v718
        %v720 = vrot.slane %v713, %v719
        %v722 = vunpack.c.l.s4 1966171168
        %v723 = vunpack.c.0.s8 %v722
        %v724 = vlaneseq
        %v725 = vshrl.u32 %v724, 7
        %v726 = vsub.s32 %v723, %v725
        %v727 = vrot.slane %v720, %v726
        %729 = vst.msk [vmem:[%s436] sm:$0x3] %vm697, %v727
        %s730 = sand.u32 %s145, 1
        %s731 = scalar_lea.sflag [#allocation5], %s730
        %s732 = sand.u32 %s145, 1
        %s733 = smul.addr %s732, 16
        %s734 = scalar_lea.vmem [#allocation4], %s733
        %s735 = sand.u32 %s171, 1
        %s736 = scalar_lea.sflag [#allocation7], %s735
        %s737 = sand.u32 %s171, 1
        %s738 = smul.addr %s737, 2
        %s739 = scalar_lea.vmem [#allocation6], %s738
        %s740 = smul.u32 2, %s27
        %p741 = scmp.lt.s32.totalorder %s740, 3
        %s742 = scalar_select %p741, %s740, 3
        %s743 = scalar_lea.vmem %s7, %s742
        // Predicated region
        $region64: #{unet_multiscale_forward.9} parent=58 // pred_check
          %p744 = pneg %p155
        $region65: #{unet_multiscale_forward.9} parent=58 // pred_check_branch
          %746 = sbr.rel (%p744) target = $region67
        $region66: #{unet_multiscale_forward.9} parent=58 // pred_region
          %s747 = smul.u32 2, %s27
          %s749 = ssub.s32 256, 256
          %750 = vsyncadd %s731, %s749
          %s751 = smul.addr %s747, 128
          %s752 = scalar_lea.hbm %s5, %s751
          %s754 = sshll.u32 %s734, 4
          %s755 = int_to_ptr.vmem [resolvable:$true] %s754
          %757 = dma.vmem_to_hbm [thread:$0]  %s755, 256, %s752, %s731
        $region67: #{unet_multiscale_forward.9} parent=58 // pred_fallthru
          _
        // Predicated region
        $region68: #{unet_multiscale_forward.9} parent=58 // pred_check
          %p758 = pneg %p181
        $region69: #{unet_multiscale_forward.9} parent=58 // pred_check_branch
          %760 = sbr.rel (%p758) target = $region71
        $region70: #{unet_multiscale_forward.9} parent=58 // pred_region
          %s761 = smul.u32 2, %s27
          %s763 = ssub.s32 32, 32
          %764 = vsyncadd %s736, %s763
          %s765 = smul.addr %s761, 16
          %s766 = scalar_lea.hbm %s6, %s765
          %s768 = sshll.u32 %s739, 4
          %s769 = int_to_ptr.vmem [resolvable:$true] %s768
          %771 = dma.vmem_to_hbm [thread:$0]  %s769, 32, %s766, %s736
        $region71: #{unet_multiscale_forward.9} parent=58 // pred_fallthru
          _
        // Predicated region
        $region72: #{unet_multiscale_forward.9} parent=58 // pred_check
          %p772 = pneg %p207
        $region73: #{unet_multiscale_forward.9} parent=58 // pred_check_branch
          %774 = sbr.rel (%p772) target = $region75
        $region74: #{unet_multiscale_forward.9} parent=58 // pred_region
          %s775 = smul.u32 2, %s27
        $region75: #{unet_multiscale_forward.9} parent=58 // pred_fallthru
          _
      $region59: #{unet_multiscale_forward.9} parent=5 // pred_fallthru
        _
      %p776 = scmp.le.s32.totalorder 2, %s22
      // Predicated region
      $region76: #{unet_multiscale_forward.9} parent=5 // pred_check
        %p777 = pneg %p776
      $region77: #{unet_multiscale_forward.9} parent=5 // pred_check_branch
        %779 = sbr.rel (%p777) target = $region79
      $region78: #{unet_multiscale_forward.9} parent=5 // pred_region
        %s780 = ssub.s32 %s22, 2
        // Predicated region
        $region80: #{unet_multiscale_forward.9} parent=78 // pred_check
          %p781 = pneg %p161
        $region81: #{unet_multiscale_forward.9} parent=78 // pred_check_branch
          %783 = sbr.rel (%p781) target = $region83
        $region82: #{unet_multiscale_forward.9} parent=78 // pred_region
          %s784 = sand.u32 %s146, 1
          %s785 = scalar_lea.sflag [#allocation5], %s784
          %s786 = sand.u32 %s146, 1
          %s787 = smul.addr %s786, 16
          %s788 = scalar_lea.vmem [#allocation4], %s787
          %789 = dma.done %s785, 256
        $region83: #{unet_multiscale_forward.9} parent=78 // pred_fallthru
          _
        // Predicated region
        $region84: #{unet_multiscale_forward.9} parent=78 // pred_check
          %p790 = pneg %p187
        $region85: #{unet_multiscale_forward.9} parent=78 // pred_check_branch
          %792 = sbr.rel (%p790) target = $region87
        $region86: #{unet_multiscale_forward.9} parent=78 // pred_region
          %s793 = sand.u32 %s172, 1
          %s794 = scalar_lea.sflag [#allocation7], %s793
          %s795 = sand.u32 %s172, 1
          %s796 = smul.addr %s795, 2
          %s797 = scalar_lea.vmem [#allocation6], %s796
          %798 = dma.done %s794, 32
        $region87: #{unet_multiscale_forward.9} parent=78 // pred_fallthru
          _
        // Predicated region
        $region88: #{unet_multiscale_forward.9} parent=78 // pred_check
          %p799 = pneg %p213
        $region89: #{unet_multiscale_forward.9} parent=78 // pred_check_branch
          %801 = sbr.rel (%p799) target = $region91
        $region90: #{unet_multiscale_forward.9} parent=78 // pred_region
          %s802 = smul.u32 2, %s28
          %p803 = scmp.lt.s32.totalorder %s802, 3
          %s804 = scalar_select %p803, %s802, 3
          %s805 = scalar_lea.vmem %s7, %s804
        $region91: #{unet_multiscale_forward.9} parent=78 // pred_fallthru
          _
      $region79: #{unet_multiscale_forward.9} parent=5 // pred_fallthru
        _
    $region6: #{unet_multiscale_forward.9} parent=1 // loop_footer
      %s26 = sadd.s32 1, %s22
    $region7: #{unet_multiscale_forward.9} parent=1 // loop_footer_branch
      %21 = sbr.rel target = $region3
    $region8: #{unet_multiscale_forward.9} parent=1 // loop_exit
      _
    %806 = vsyncpa [#allocation5], 1
    %s807 = scalar_lea.sflag [#allocation5], 1
    %808 = vsyncpa %s807, 1
    %809 = vsyncpa [#allocation7], 1
    %s810 = scalar_lea.sflag [#allocation7], 1
    %811 = vsyncpa %s810, 1

</llo_original>
